<compile_context>
chip_gen: v6e
topology: v6e:2x2x1
jax: 0.10.0
libtpu: 0.0.40
codegen_flags: <defaults>
</compile_context>

<pallas_src>
import functools

import jax
import jax.numpy as jnp
from jax.experimental import pallas as pl
from jax.experimental.pallas import tpu as pltpu

IN_FEATURES = 28 * 28          # 784
HIDDEN = 512
W2_PAD = 128                   # layer-2 output padded to one full lane tile


def _round_up(x, m):
    return ((x + m - 1) // m) * m


def _discriminator_kernel(x_ref, w1_ref, b1_ref, w2_ref, b2_ref, o_ref):
    # x_ref : (TILE_B, 784) f32      w1_ref: (784, 512) bf16
    # b1_ref: (1, 512) f32           w2_ref: (512, 128) bf16 (col 0 = real W2)
    # b2_ref: (1, 1) f32             o_ref : (TILE_B, 1) f32

    # Layer 1 on the MXU: cast activations to bf16 in-kernel, accumulate f32.
    x = x_ref[...].astype(jnp.bfloat16)
    h = jnp.dot(x, w1_ref[...], preferred_element_type=jnp.float32)
    h = h + b1_ref[...]                          # (TILE_B, 512) f32
    h = jnp.maximum(h, 0.2 * h)                  # LeakyReLU(0.2)

    # Layer 2 on the MXU against a 128-wide zero-padded W2; take column 0.
    z = jnp.dot(h.astype(jnp.bfloat16), w2_ref[...],
                preferred_element_type=jnp.float32)      # (TILE_B, 128)
    z = z[:, 0:1] + b2_ref[...]                          # (TILE_B, 1)

    # Sigmoid: EUP exp + exact reciprocal (keeps output strictly in (0, 1)).
    o_ref[...] = 1.0 / (1.0 + jnp.exp(-z))


def prepare_params(w1, b1, w2, b2):
    """One-time packing of torch-layout params into kernel layout.

    w1: (784, 512) f32 -> (784, 512) bf16
    b1: (512,)     f32 -> (1, 512)   f32
    w2: (512, 1)   f32 -> (512, 128) bf16 (only column 0 non-zero)
    b2: (1,)       f32 -> (1, 1)     f32
    """
    w1p = w1.astype(jnp.bfloat16)
    b1p = b1.reshape(1, HIDDEN).astype(jnp.float32)
    w2p = jnp.pad(w2.reshape(HIDDEN, 1),
                  ((0, 0), (0, W2_PAD - 1))).astype(jnp.bfloat16)
    b2p = b2.reshape(1, 1).astype(jnp.float32)
    return w1p, b1p, w2p, b2p


@functools.partial(jax.jit, static_argnames=("tile_b",))
def discriminator_forward(x_nchw, w1p, b1p, w2p, b2p, *, tile_b=2048):
    """x_nchw: (B, 1, 28, 28) f32 -> (B, 1) f32 validity scores."""
    B = x_nchw.shape[0]
    x = x_nchw.reshape(B, IN_FEATURES)            # torch .view(-1, 784), stays f32

    # Batch tile: amortize per-grid-step overhead for big B without padding a
    # tiny batch all the way up to the default tile.
    tb = min(_round_up(tile_b, 16), _round_up(B, 16))
    b_pad = _round_up(B, tb)
    if b_pad != B:
        x = jnp.pad(x, ((0, b_pad - B), (0, 0)))  # batch tail only

    grid = (b_pad // tb,)
    flops = (2 * b_pad * IN_FEATURES * HIDDEN     # layer 1
             + 2 * b_pad * HIDDEN * W2_PAD        # layer 2 (padded)
             + 3 * b_pad * HIDDEN)                # bias + LeakyReLU
    bytes_accessed = (x.size * 4 + w1p.size * 2 + w2p.size * 2
                      + (b1p.size + b2p.size + b_pad) * 4)

    out = pl.pallas_call(
        _discriminator_kernel,
        out_shape=jax.ShapeDtypeStruct((b_pad, 1), jnp.float32),
        grid=grid,
        in_specs=[
            pl.BlockSpec((tb, IN_FEATURES), lambda i: (i, 0)),   # x tile (pipelined)
            pl.BlockSpec((IN_FEATURES, HIDDEN), lambda i: (0, 0)),  # W1, VMEM-resident
            pl.BlockSpec((1, HIDDEN), lambda i: (0, 0)),         # b1
            pl.BlockSpec((HIDDEN, W2_PAD), lambda i: (0, 0)),    # W2 padded
            pl.BlockSpec((1, 1), lambda i: (0, 0)),              # b2
        ],
        out_specs=pl.BlockSpec((tb, 1), lambda i: (i, 0)),
        compiler_params=pltpu.CompilerParams(
            dimension_semantics=("parallel",),
            vmem_limit_bytes=48 * 1024 * 1024,    # explicit budget (v7x: 64 MiB phys)
        ),
        cost_estimate=pl.CostEstimate(
            flops=flops,
            transcendentals=b_pad,
            bytes_accessed=bytes_accessed,
        ),
    )(x, w1p, b1p, w2p, b2p)

    return out[:B]


def init_params(key):
    """Torch-layout params, nn.Linear-style U(-1/sqrt(fan_in), 1/sqrt(fan_in))."""
    k1, k2, k3, k4 = jax.random.split(key, 4)
    bound1 = 1.0 / jnp.sqrt(jnp.float32(IN_FEATURES))
    bound2 = 1.0 / jnp.sqrt(jnp.float32(HIDDEN))
    w1 = jax.random.uniform(k1, (IN_FEATURES, HIDDEN), jnp.float32, -bound1, bound1)
    b1 = jax.random.uniform(k2, (HIDDEN,), jnp.float32, -bound1, bound1)
    w2 = jax.random.uniform(k3, (HIDDEN, 1), jnp.float32, -bound2, bound2)
    b2 = jax.random.uniform(k4, (1,), jnp.float32, -bound2, bound2)
    return w1, b1, w2, b2


if __name__ == "__main__":
    key = jax.random.PRNGKey(0)
    k_params, k_x = jax.random.split(key)

    w1, b1, w2, b2 = init_params(k_params)
    params = prepare_params(w1, b1, w2, b2)

    # Small batch of "images" in NCHW, as the GAN discriminator would receive.
    B = 2
    x = jax.random.normal(k_x, (B, 1, 28, 28), jnp.float32)

    out = discriminator_forward(x, *params)
    out = jax.block_until_ready(out)

    # Pure-JAX f32 reference (same math as the PyTorch module).
    xf = x.reshape(B, -1)
    h = xf @ w1 + b1
    h = jnp.where(h > 0, h, 0.2 * h)
    ref = jax.nn.sigmoid(h @ w2 + b2.reshape(1, 1))

    assert out.shape == (B, 1)
    # bf16 MXU inputs -> loosen tolerance vs pure-f32 reference.
    assert jnp.allclose(out, ref, atol=2e-2, rtol=2e-2), (
        f"max abs diff = {jnp.max(jnp.abs(out - ref))}")

    print("KERNEL_OK")
</pallas_src>

<mosaic_0001>
module attributes {stable_mosaic.version = 11 : i64} {
  func.func @_discriminator_kernel(%arg0: i32, %arg1: memref<16x784xf32, #tpu.memory_space<vmem>>, %arg2: memref<784x512xbf16, #tpu.memory_space<vmem>>, %arg3: memref<1x512xf32, #tpu.memory_space<vmem>>, %arg4: memref<512x128xbf16, #tpu.memory_space<vmem>>, %arg5: memref<1x1xf32, #tpu.memory_space<vmem>>, %arg6: memref<16x1xf32, #tpu.memory_space<vmem>>) attributes {dimension_semantics = [#tpu.dimension_semantics<parallel>], iteration_bounds = array<i64: 1>, scalar_prefetch = 0 : i64, scratch_operands = 0 : i64, tpu.core_type = #tpu.core_type<tc>, window_params = [{transform_indices = @transform_0, window_bounds = array<i64: 16, 784>}, {pipeline_mode = #tpu.pipeline_mode<synchronous>, transform_indices = @transform_1, window_bounds = array<i64: 784, 512>}, {pipeline_mode = #tpu.pipeline_mode<synchronous>, transform_indices = @transform_2, window_bounds = array<i64: 1, 512>}, {pipeline_mode = #tpu.pipeline_mode<synchronous>, transform_indices = @transform_3, window_bounds = array<i64: 512, 128>}, {pipeline_mode = #tpu.pipeline_mode<synchronous>, transform_indices = @transform_4, window_bounds = array<i64: 1, 1>}, {transform_indices = @transform_5, window_bounds = array<i64: 16, 1>}]} {
    %c0 = arith.constant 0 : index
    %c0_0 = arith.constant 0 : index
    %0 = vector.load %arg1[%c0, %c0_0] : memref<16x784xf32, #tpu.memory_space<vmem>>, vector<16x784xf32>
    %1 = arith.truncf %0 : vector<16x784xf32> to vector<16x784xbf16>
    %c0_1 = arith.constant 0 : index
    %c0_2 = arith.constant 0 : index
    %2 = vector.load %arg2[%c0_1, %c0_2] : memref<784x512xbf16, #tpu.memory_space<vmem>>, vector<784x512xbf16>
    %cst = arith.constant dense<0.000000e+00> : vector<16x512xf32>
    %3 = tpu.matmul %1, %2, %cst {dimension_numbers = #tpu.dot_dimension_numbers<[1], [0], [0], [1], [0, 0, 1, 1], [], []>} : vector<16x784xbf16>, vector<784x512xbf16>, vector<16x512xf32> -> vector<16x512xf32>
    %c0_3 = arith.constant 0 : index
    %c0_4 = arith.constant 0 : index
    %4 = vector.load %arg3[%c0_3, %c0_4] : memref<1x512xf32, #tpu.memory_space<vmem>>, vector<1x512xf32>
    %5 = vector.broadcast %4 : vector<1x512xf32> to vector<16x512xf32>
    %6 = arith.addf %3, %5 : vector<16x512xf32>
    %cst_5 = arith.constant 2.000000e-01 : f32
    %7 = vector.broadcast %cst_5 : f32 to vector<16x512xf32>
    %8 = arith.mulf %7, %6 : vector<16x512xf32>
    %9 = arith.maximumf %6, %8 : vector<16x512xf32>
    %10 = arith.truncf %9 : vector<16x512xf32> to vector<16x512xbf16>
    %c0_6 = arith.constant 0 : index
    %c0_7 = arith.constant 0 : index
    %11 = vector.load %arg4[%c0_6, %c0_7] : memref<512x128xbf16, #tpu.memory_space<vmem>>, vector<512x128xbf16>
    %cst_8 = arith.constant dense<0.000000e+00> : vector<16x128xf32>
    %12 = tpu.matmul %10, %11, %cst_8 {dimension_numbers = #tpu.dot_dimension_numbers<[1], [0], [0], [1], [0, 0, 1, 1], [], []>} : vector<16x512xbf16>, vector<512x128xbf16>, vector<16x128xf32> -> vector<16x128xf32>
    %13 = vector.extract_strided_slice %12 {offsets = [0, 0], sizes = [16, 1], strides = [1, 1]} : vector<16x128xf32> to vector<16x1xf32>
    %c0_9 = arith.constant 0 : index
    %c0_10 = arith.constant 0 : index
    %14 = vector.load %arg5[%c0_9, %c0_10] : memref<1x1xf32, #tpu.memory_space<vmem>>, vector<1x1xf32>
    %15 = vector.broadcast %14 : vector<1x1xf32> to vector<16x1xf32>
    %16 = arith.addf %13, %15 : vector<16x1xf32>
    %cst_11 = arith.constant 0.000000e+00 : f32
    %17 = vector.broadcast %cst_11 : f32 to vector<16x1xf32>
    %18 = arith.subf %17, %16 : vector<16x1xf32>
    %19 = math.exp %18 : vector<16x1xf32>
    %cst_12 = arith.constant 1.000000e+00 : f32
    %20 = vector.broadcast %cst_12 : f32 to vector<16x1xf32>
    %21 = arith.addf %20, %19 : vector<16x1xf32>
    %cst_13 = arith.constant 1.000000e+00 : f32
    %22 = vector.broadcast %cst_13 : f32 to vector<16x1xf32>
    %23 = arith.divf %22, %21 : vector<16x1xf32>
    %c0_14 = arith.constant 0 : index
    %c0_15 = arith.constant 0 : index
    %24 = vector.load %arg6[%c0_14, %c0_15] : memref<16x1xf32, #tpu.memory_space<vmem>>, vector<16x1xf32>
    tpu.vector_store %arg6[%c0_14, %c0_15], %23 {strides = array<i32>} : memref<16x1xf32, #tpu.memory_space<vmem>>, vector<16x1xf32>,
    return
  }
  func.func @transform_0(%arg0: i32) -> (i32, i32) {
    %c0_i32 = arith.constant 0 : i32
    %c0_i32_0 = arith.constant 0 : i32
    return %arg0, %c0_i32 : i32, i32
  }
  func.func @transform_1(%arg0: i32) -> (i32, i32) {
    %c0_i32 = arith.constant 0 : i32
    %c0_i32_0 = arith.constant 0 : i32
    %c0_i32_1 = arith.constant 0 : i32
    return %c0_i32, %c0_i32_0 : i32, i32
  }
  func.func @transform_2(%arg0: i32) -> (i32, i32) {
    %c0_i32 = arith.constant 0 : i32
    %c0_i32_0 = arith.constant 0 : i32
    %c0_i32_1 = arith.constant 0 : i32
    return %c0_i32, %c0_i32_0 : i32, i32
  }
  func.func @transform_3(%arg0: i32) -> (i32, i32) {
    %c0_i32 = arith.constant 0 : i32
    %c0_i32_0 = arith.constant 0 : i32
    %c0_i32_1 = arith.constant 0 : i32
    return %c0_i32, %c0_i32_0 : i32, i32
  }
  func.func @transform_4(%arg0: i32) -> (i32, i32) {
    %c0_i32 = arith.constant 0 : i32
    %c0_i32_0 = arith.constant 0 : i32
    %c0_i32_1 = arith.constant 0 : i32
    return %c0_i32, %c0_i32_0 : i32, i32
  }
  func.func @transform_5(%arg0: i32) -> (i32, i32) {
    %c0_i32 = arith.constant 0 : i32
    %c0_i32_0 = arith.constant 0 : i32
    return %arg0, %c0_i32 : i32, i32
  }
}

</mosaic_0001>

<llo_original>
// kernel: discriminator_forward.1
$region0: #{discriminator_forward.1}
  #allocation0 [shape = 'u32[]', space=smem, size = 0x4, offset = 0x4, fixed_abs, tag = 'smem constant byte address 0x4 - core index']
  #allocation1 [shape = 'u32[144,128]{1,0:T(1,128)}', space=vmem, size = 0x12000, scoped, tag = 'internal scratch']
  #allocation2 [shape = 'f32[1,1]{1,0:T(1,128)S(1)}', space=vmem, size = 0x200, scoped, tag = 'scoped memory for discriminator_forward.1']
  %s0 = inlined_call_operand.vmem [shape: f32[16,784], index: 0, kind: input, shape index: {}]
  %s1 = inlined_call_operand.hbm [shape: bf16[784,512], index: 1, kind: input, shape index: {}]
  %s2 = inlined_call_operand.vmem [shape: f32[1,512], index: 2, kind: input, shape index: {}]
  %s3 = inlined_call_operand.vmem [shape: bf16[512,128], index: 3, kind: input, shape index: {}]
  %s4 = inlined_call_operand.<no memory space> [shape: f32[1,1], index: 4, kind: input, shape index: {}]
  %s5 = inlined_call_operand.vmem [shape: f32[16,1], index: 5, kind: output, shape index: {}]
  %s6 = sld [smem:[#allocation0]]
  $region34: #{discriminator_forward.1} parent=0
    _
  %s8 = ssub.s32 1, %s6
  %s9 = scalar_select 0, %s8, %s6
  %v10 = vstv %s4
  %11 = vst [vmem:[#allocation2] sm:$0x1] %v10
  $region1: #{discriminator_forward.1} parent=0
    #allocation3 [shape = 'u8[802816]{0}', space=vmem, size = 0xc4000, scoped, tag = 'input window, operand 1, single buffered']
    #allocation4 [shape = 's32[1]{0}', space=sflag, size = 0x4, scoped, tag = 'scoped memory for discriminator_forward.1']
    %12 = vsyncpa [#allocation4], 0
    // Predicated region
    $region2: #{discriminator_forward.1} parent=1 // pred_check
      _
    $region3: #{discriminator_forward.1} parent=1 // pred_check_branch
      %14 = sbr.rel (0) target = $region5
    $region4: #{discriminator_forward.1} parent=1 // pred_region
      _
    $region5: #{discriminator_forward.1} parent=1 // pred_fallthru
      _
    // Predicated region
    $region6: #{discriminator_forward.1} parent=1 // pred_check
      _
    $region7: #{discriminator_forward.1} parent=1 // pred_check_branch
      %16 = sbr.rel (0) target = $region9
    $region8: #{discriminator_forward.1} parent=1 // pred_region
      %s18 = ssub.s32 25088, 25088
      %19 = vsyncadd [#allocation4], %s18
      %s20 = sshll.u32 [#allocation3], 4
      %s21 = int_to_ptr.vmem [resolvable:$true] %s20
      %26 = dma.hbm_to_vmem [thread:$0]  %s1, 25088, %s21, [#allocation4], 256, 256, 16
    $region9: #{discriminator_forward.1} parent=1 // pred_fallthru
      _
    // Predicated region
    $region10: #{discriminator_forward.1} parent=1 // pred_check
      _
    $region11: #{discriminator_forward.1} parent=1 // pred_check_branch
      %28 = sbr.rel (0) target = $region13
    $region12: #{discriminator_forward.1} parent=1 // pred_region
      _
    $region13: #{discriminator_forward.1} parent=1 // pred_fallthru
      _
    // Predicated region
    $region14: #{discriminator_forward.1} parent=1 // pred_check
      _
    $region15: #{discriminator_forward.1} parent=1 // pred_check_branch
      %30 = sbr.rel (0) target = $region17
    $region16: #{discriminator_forward.1} parent=1 // pred_region
      _
    $region17: #{discriminator_forward.1} parent=1 // pred_fallthru
      _
    // Predicated region
    $region18: #{discriminator_forward.1} parent=1 // pred_check
      _
    $region19: #{discriminator_forward.1} parent=1 // pred_check_branch
      %32 = sbr.rel (0) target = $region21
    $region20: #{discriminator_forward.1} parent=1 // pred_region
      _
    $region21: #{discriminator_forward.1} parent=1 // pred_fallthru
      _
    // Predicated region
    $region22: #{discriminator_forward.1} parent=1 // pred_check
      _
    $region23: #{discriminator_forward.1} parent=1 // pred_check_branch
      %34 = sbr.rel (0) target = $region25
    $region24: #{discriminator_forward.1} parent=1 // pred_region
      %35 = dma.done [#allocation4], 25088
    $region25: #{discriminator_forward.1} parent=1 // pred_fallthru
      _
    %v37 = vld [vmem:[%s0] sm:$0xff]
    %v38 = vld [vmem:[%s0 + $0x8] sm:$0xff]
    %v39 = vld [vmem:[%s0 + $0x10] sm:$0xff]
    %v40 = vld [vmem:[%s0 + $0x18] sm:$0xff]
    %v41 = vld [vmem:[%s0 + $0x20] sm:$0xff]
    %v42 = vld [vmem:[%s0 + $0x28] sm:$0xff]
    %v43 = vld [vmem:[%s0 + $0x30] sm:$0xff]
    %v44 = vld [vmem:[%s0 + $0x38] sm:$0xff]
    %v45 = vld [vmem:[%s0 + $0x40] sm:$0xff]
    %v46 = vld [vmem:[%s0 + $0x48] sm:$0xff]
    %v47 = vld [vmem:[%s0 + $0x50] sm:$0xff]
    %v48 = vld [vmem:[%s0 + $0x58] sm:$0xff]
    %v49 = vld [vmem:[%s0 + $0x60] sm:$0xff]
    %v50 = vld [vmem:[%s0 + $0x68] sm:$0xff]
    %v51 = vpack.c.bf16 %v44, %v37
    %v52 = vpack.c.bf16 %v45, %v38
    %v53 = vpack.c.bf16 %v46, %v39
    %v54 = vpack.c.bf16 %v47, %v40
    %v55 = vpack.c.bf16 %v48, %v41
    %v56 = vpack.c.bf16 %v49, %v42
    %v57 = vpack.c.bf16 %v50, %v43
    %v58 = vld [vmem:[#allocation3] sm:$0xff]
    %v59 = vld [vmem:[#allocation3 + $0x8] sm:$0xff]
    %v60 = vld [vmem:[#allocation3 + $0x10] sm:$0xff]
    %v61 = vld [vmem:[#allocation3 + $0x18] sm:$0xff]
    %v62 = vld [vmem:[#allocation3 + $0x20] sm:$0xff]
    %v63 = vld [vmem:[#allocation3 + $0x28] sm:$0xff]
    %v64 = vld [vmem:[#allocation3 + $0x30] sm:$0xff]
    %v65 = vld [vmem:[#allocation3 + $0x38] sm:$0xff]
    %v66 = vld [vmem:[#allocation3 + $0x40] sm:$0xff]
    %v67 = vld [vmem:[#allocation3 + $0x48] sm:$0xff]
    %v68 = vld [vmem:[#allocation3 + $0x50] sm:$0xff]
    %v69 = vld [vmem:[#allocation3 + $0x58] sm:$0xff]
    %v70 = vld [vmem:[#allocation3 + $0x60] sm:$0xff]
    %v71 = vld [vmem:[#allocation3 + $0x68] sm:$0xff]
    %v72 = vld [vmem:[#allocation3 + $0x70] sm:$0xff]
    %v73 = vld [vmem:[#allocation3 + $0x78] sm:$0xff]
    %v74 = vld [vmem:[#allocation3 + $0x80] sm:$0xff]
    %v75 = vld [vmem:[#allocation3 + $0x88] sm:$0xff]
    %v76 = vld [vmem:[#allocation3 + $0x90] sm:$0xff]
    %v77 = vld [vmem:[#allocation3 + $0x98] sm:$0xff]
    %v78 = vld [vmem:[#allocation3 + $0xa0] sm:$0xff]
    %v79 = vld [vmem:[#allocation3 + $0xa8] sm:$0xff]
    %v80 = vld [vmem:[#allocation3 + $0xb0] sm:$0xff]
    %v81 = vld [vmem:[#allocation3 + $0xb8] sm:$0xff]
    %v82 = vld [vmem:[#allocation3 + $0xc0] sm:$0xff]
    %v83 = vld [vmem:[#allocation3 + $0xc8] sm:$0xff]
    %v84 = vld [vmem:[#allocation3 + $0xd0] sm:$0xff]
    %v85 = vld [vmem:[#allocation3 + $0xd8] sm:$0xff]
    %v86 = vld [vmem:[#allocation3 + $0xe0] sm:$0xff]
    %v87 = vld [vmem:[#allocation3 + $0xe8] sm:$0xff]
    %v88 = vld [vmem:[#allocation3 + $0xf0] sm:$0xff]
    %v89 = vld [vmem:[#allocation3 + $0xf8] sm:$0xff]
    %v90 = vld [vmem:[#allocation3 + $0x100] sm:$0xff]
    %v91 = vld [vmem:[#allocation3 + $0x108] sm:$0xff]
    %v92 = vld [vmem:[#allocation3 + $0x110] sm:$0xff]
    %v93 = vld [vmem:[#allocation3 + $0x118] sm:$0xff]
    %v94 = vld [vmem:[#allocation3 + $0x120] sm:$0xff]
    %v95 = vld [vmem:[#allocation3 + $0x128] sm:$0xff]
    %v96 = vld [vmem:[#allocation3 + $0x130] sm:$0xff]
    %v97 = vld [vmem:[#allocation3 + $0x138] sm:$0xff]
    %v98 = vld [vmem:[#allocation3 + $0x140] sm:$0xff]
    %v99 = vld [vmem:[#allocation3 + $0x148] sm:$0xff]
    %v100 = vld [vmem:[#allocation3 + $0x150] sm:$0xff]
    %v101 = vld [vmem:[#allocation3 + $0x158] sm:$0xff]
    %v102 = vld [vmem:[#allocation3 + $0x160] sm:$0xff]
    %v103 = vld [vmem:[#allocation3 + $0x168] sm:$0xff]
    %v104 = vld [vmem:[#allocation3 + $0x170] sm:$0xff]
    %v105 = vld [vmem:[#allocation3 + $0x178] sm:$0xff]
    %v106 = vld [vmem:[#allocation3 + $0x180] sm:$0xff]
    %v107 = vld [vmem:[#allocation3 + $0x188] sm:$0xff]
    %v108 = vld [vmem:[#allocation3 + $0x190] sm:$0xff]
    %v109 = vld [vmem:[#allocation3 + $0x198] sm:$0xff]
    %v110 = vld [vmem:[#allocation3 + $0x1a0] sm:$0xff]
    %v111 = vld [vmem:[#allocation3 + $0x1a8] sm:$0xff]
    %v112 = vld [vmem:[#allocation3 + $0x1b0] sm:$0xff]
    %v113 = vld [vmem:[#allocation3 + $0x1b8] sm:$0xff]
    %v114 = vld [vmem:[#allocation3 + $0x1c0] sm:$0xff]
    %v115 = vld [vmem:[#allocation3 + $0x1c8] sm:$0xff]
    %v116 = vld [vmem:[#allocation3 + $0x1d0] sm:$0xff]
    %v117 = vld [vmem:[#allocation3 + $0x1d8] sm:$0xff]
    %v118 = vld [vmem:[#allocation3 + $0x1e0] sm:$0xff]
    %v119 = vld [vmem:[#allocation3 + $0x1e8] sm:$0xff]
    %v120 = vld [vmem:[#allocation3 + $0x1f0] sm:$0xff]
    %v121 = vld [vmem:[#allocation3 + $0x1f8] sm:$0xff]
    %v122 = vld [vmem:[#allocation3 + $0x200] sm:$0xff]
    %v123 = vld [vmem:[#allocation3 + $0x208] sm:$0xff]
    %v124 = vld [vmem:[#allocation3 + $0x210] sm:$0xff]
    %v125 = vld [vmem:[#allocation3 + $0x218] sm:$0xff]
    %v126 = vld [vmem:[#allocation3 + $0x220] sm:$0xff]
    %v127 = vld [vmem:[#allocation3 + $0x228] sm:$0xff]
    %v128 = vld [vmem:[#allocation3 + $0x230] sm:$0xff]
    %v129 = vld [vmem:[#allocation3 + $0x238] sm:$0xff]
    %v130 = vld [vmem:[#allocation3 + $0x240] sm:$0xff]
    %v131 = vld [vmem:[#allocation3 + $0x248] sm:$0xff]
    %v132 = vld [vmem:[#allocation3 + $0x250] sm:$0xff]
    %v133 = vld [vmem:[#allocation3 + $0x258] sm:$0xff]
    %v134 = vld [vmem:[#allocation3 + $0x260] sm:$0xff]
    %v135 = vld [vmem:[#allocation3 + $0x268] sm:$0xff]
    %v136 = vld [vmem:[#allocation3 + $0x270] sm:$0xff]
    %v137 = vld [vmem:[#allocation3 + $0x278] sm:$0xff]
    %v138 = vld [vmem:[#allocation3 + $0x280] sm:$0xff]
    %v139 = vld [vmem:[#allocation3 + $0x288] sm:$0xff]
    %v140 = vld [vmem:[#allocation3 + $0x290] sm:$0xff]
    %v141 = vld [vmem:[#allocation3 + $0x298] sm:$0xff]
    %v142 = vld [vmem:[#allocation3 + $0x2a0] sm:$0xff]
    %v143 = vld [vmem:[#allocation3 + $0x2a8] sm:$0xff]
    %v144 = vld [vmem:[#allocation3 + $0x2b0] sm:$0xff]
    %v145 = vld [vmem:[#allocation3 + $0x2b8] sm:$0xff]
    %v146 = vld [vmem:[#allocation3 + $0x2c0] sm:$0xff]
    %v147 = vld [vmem:[#allocation3 + $0x2c8] sm:$0xff]
    %v148 = vld [vmem:[#allocation3 + $0x2d0] sm:$0xff]
    %v149 = vld [vmem:[#allocation3 + $0x2d8] sm:$0xff]
    %v150 = vld [vmem:[#allocation3 + $0x2e0] sm:$0xff]
    %v151 = vld [vmem:[#allocation3 + $0x2e8] sm:$0xff]
    %v152 = vld [vmem:[#allocation3 + $0x2f0] sm:$0xff]
    %v153 = vld [vmem:[#allocation3 + $0x2f8] sm:$0xff]
    %v154 = vld [vmem:[#allocation3 + $0x300] sm:$0xff]
    %v155 = vld [vmem:[#allocation3 + $0x308] sm:$0xff]
    %v156 = vld [vmem:[#allocation3 + $0x310] sm:$0xff]
    %v157 = vld [vmem:[#allocation3 + $0x318] sm:$0xff]
    %v158 = vld [vmem:[#allocation3 + $0x320] sm:$0xff]
    %v159 = vld [vmem:[#allocation3 + $0x328] sm:$0xff]
    %v160 = vld [vmem:[#allocation3 + $0x330] sm:$0xff]
    %v161 = vld [vmem:[#allocation3 + $0x338] sm:$0xff]
    %v162 = vld [vmem:[#allocation3 + $0x340] sm:$0xff]
    %v163 = vld [vmem:[#allocation3 + $0x348] sm:$0xff]
    %v164 = vld [vmem:[#allocation3 + $0x350] sm:$0xff]
    %v165 = vld [vmem:[#allocation3 + $0x358] sm:$0xff]
    %v166 = vld [vmem:[#allocation3 + $0x360] sm:$0xff]
    %v167 = vld [vmem:[#allocation3 + $0x368] sm:$0xff]
    %v168 = vld [vmem:[#allocation3 + $0x370] sm:$0xff]
    %v169 = vld [vmem:[#allocation3 + $0x378] sm:$0xff]
    %v170 = vld [vmem:[#allocation3 + $0x380] sm:$0xff]
    %v171 = vld [vmem:[#allocation3 + $0x388] sm:$0xff]
    %v172 = vld [vmem:[#allocation3 + $0x390] sm:$0xff]
    %v173 = vld [vmem:[#allocation3 + $0x398] sm:$0xff]
    %v174 = vld [vmem:[#allocation3 + $0x3a0] sm:$0xff]
    %v175 = vld [vmem:[#allocation3 + $0x3a8] sm:$0xff]
    %v176 = vld [vmem:[#allocation3 + $0x3b0] sm:$0xff]
    %v177 = vld [vmem:[#allocation3 + $0x3b8] sm:$0xff]
    %v178 = vld [vmem:[#allocation3 + $0x3c0] sm:$0xff]
    %v179 = vld [vmem:[#allocation3 + $0x3c8] sm:$0xff]
    %v180 = vld [vmem:[#allocation3 + $0x3d0] sm:$0xff]
    %v181 = vld [vmem:[#allocation3 + $0x3d8] sm:$0xff]
    %v182 = vld [vmem:[#allocation3 + $0x3e0] sm:$0xff]
    %v183 = vld [vmem:[#allocation3 + $0x3e8] sm:$0xff]
    %v184 = vld [vmem:[#allocation3 + $0x3f0] sm:$0xff]
    %v185 = vld [vmem:[#allocation3 + $0x3f8] sm:$0xff]
    %v186 = vld [vmem:[#allocation3 + $0x400] sm:$0xff]
    %v187 = vld [vmem:[#allocation3 + $0x408] sm:$0xff]
    %v188 = vld [vmem:[#allocation3 + $0x410] sm:$0xff]
    %v189 = vld [vmem:[#allocation3 + $0x418] sm:$0xff]
    %v190 = vld [vmem:[#allocation3 + $0x420] sm:$0xff]
    %v191 = vld [vmem:[#allocation3 + $0x428] sm:$0xff]
    %v192 = vld [vmem:[#allocation3 + $0x430] sm:$0xff]
    %v193 = vld [vmem:[#allocation3 + $0x438] sm:$0xff]
    %v194 = vld [vmem:[#allocation3 + $0x440] sm:$0xff]
    %v195 = vld [vmem:[#allocation3 + $0x448] sm:$0xff]
    %v196 = vld [vmem:[#allocation3 + $0x450] sm:$0xff]
    %v197 = vld [vmem:[#allocation3 + $0x458] sm:$0xff]
    %v198 = vld [vmem:[#allocation3 + $0x460] sm:$0xff]
    %v199 = vld [vmem:[#allocation3 + $0x468] sm:$0xff]
    %v200 = vld [vmem:[#allocation3 + $0x470] sm:$0xff]
    %v201 = vld [vmem:[#allocation3 + $0x478] sm:$0xff]
    %v202 = vld [vmem:[#allocation3 + $0x480] sm:$0xff]
    %v203 = vld [vmem:[#allocation3 + $0x488] sm:$0xff]
    %v204 = vld [vmem:[#allocation3 + $0x490] sm:$0xff]
    %v205 = vld [vmem:[#allocation3 + $0x498] sm:$0xff]
    %v206 = vld [vmem:[#allocation3 + $0x4a0] sm:$0xff]
    %v207 = vld [vmem:[#allocation3 + $0x4a8] sm:$0xff]
    %v208 = vld [vmem:[#allocation3 + $0x4b0] sm:$0xff]
    %v209 = vld [vmem:[#allocation3 + $0x4b8] sm:$0xff]
    %v210 = vld [vmem:[#allocation3 + $0x4c0] sm:$0xff]
    %v211 = vld [vmem:[#allocation3 + $0x4c8] sm:$0xff]
    %v212 = vld [vmem:[#allocation3 + $0x4d0] sm:$0xff]
    %v213 = vld [vmem:[#allocation3 + $0x4d8] sm:$0xff]
    %v214 = vld [vmem:[#allocation3 + $0x4e0] sm:$0xff]
    %v215 = vld [vmem:[#allocation3 + $0x4e8] sm:$0xff]
    %v216 = vld [vmem:[#allocation3 + $0x4f0] sm:$0xff]
    %v217 = vld [vmem:[#allocation3 + $0x4f8] sm:$0xff]
    %v218 = vld [vmem:[#allocation3 + $0x500] sm:$0xff]
    %v219 = vld [vmem:[#allocation3 + $0x508] sm:$0xff]
    %v220 = vld [vmem:[#allocation3 + $0x510] sm:$0xff]
    %v221 = vld [vmem:[#allocation3 + $0x518] sm:$0xff]
    %v222 = vld [vmem:[#allocation3 + $0x520] sm:$0xff]
    %v223 = vld [vmem:[#allocation3 + $0x528] sm:$0xff]
    %v224 = vld [vmem:[#allocation3 + $0x530] sm:$0xff]
    %v225 = vld [vmem:[#allocation3 + $0x538] sm:$0xff]
    %v226 = vld [vmem:[#allocation3 + $0x540] sm:$0xff]
    %v227 = vld [vmem:[#allocation3 + $0x548] sm:$0xff]
    %v228 = vld [vmem:[#allocation3 + $0x550] sm:$0xff]
    %v229 = vld [vmem:[#allocation3 + $0x558] sm:$0xff]
    %v230 = vld [vmem:[#allocation3 + $0x560] sm:$0xff]
    %v231 = vld [vmem:[#allocation3 + $0x568] sm:$0xff]
    %v232 = vld [vmem:[#allocation3 + $0x570] sm:$0xff]
    %v233 = vld [vmem:[#allocation3 + $0x578] sm:$0xff]
    %v234 = vld [vmem:[#allocation3 + $0x580] sm:$0xff]
    %v235 = vld [vmem:[#allocation3 + $0x588] sm:$0xff]
    %v236 = vld [vmem:[#allocation3 + $0x590] sm:$0xff]
    %v237 = vld [vmem:[#allocation3 + $0x598] sm:$0xff]
    %v238 = vld [vmem:[#allocation3 + $0x5a0] sm:$0xff]
    %v239 = vld [vmem:[#allocation3 + $0x5a8] sm:$0xff]
    %v240 = vld [vmem:[#allocation3 + $0x5b0] sm:$0xff]
    %v241 = vld [vmem:[#allocation3 + $0x5b8] sm:$0xff]
    %v242 = vld [vmem:[#allocation3 + $0x5c0] sm:$0xff]
    %v243 = vld [vmem:[#allocation3 + $0x5c8] sm:$0xff]
    %v244 = vld [vmem:[#allocation3 + $0x5d0] sm:$0xff]
    %v245 = vld [vmem:[#allocation3 + $0x5d8] sm:$0xff]
    %v246 = vld [vmem:[#allocation3 + $0x5e0] sm:$0xff]
    %v247 = vld [vmem:[#allocation3 + $0x5e8] sm:$0xff]
    %v248 = vld [vmem:[#allocation3 + $0x5f0] sm:$0xff]
    %v249 = vld [vmem:[#allocation3 + $0x5f8] sm:$0xff]
    %v250 = vld [vmem:[#allocation3 + $0x600] sm:$0xff]
    %v251 = vld [vmem:[#allocation3 + $0x608] sm:$0xff]
    %v252 = vld [vmem:[#allocation3 + $0x610] sm:$0xff]
    %v253 = vld [vmem:[#allocation3 + $0x618] sm:$0xff]
    %v254 = vld [vmem:[%s2] sm:$0xf]
    %v256 = vlaneseq
    %v257 = vshrl.u32 %v256, 7
    %v258 = vsub.s32 0, %v257
    %v259 = vrot.slane %v254, %v258
    %v260 = vlaneseq
    %v261 = vshrl.u32 %v260, 7
    %v262 = vsub.s32 1, %v261
    %v263 = vrot.slane %v254, %v262
    %v264 = vlaneseq
    %v265 = vshrl.u32 %v264, 7
    %v266 = vsub.s32 2, %v265
    %v267 = vrot.slane %v254, %v266
    %v268 = vlaneseq
    %v269 = vshrl.u32 %v268, 7
    %v270 = vsub.s32 3, %v269
    %v271 = vrot.slane %v254, %v270
    %v472 = vunpack.c.l.b16 %v58
    %v473 = vunpack.c.h.b16 %v58
    %v474 = vunpack.c.l.b16 %v59
    %v475 = vunpack.c.h.b16 %v59
    %v476 = vunpack.c.l.b16 %v60
    %v477 = vunpack.c.h.b16 %v60
    %v478 = vunpack.c.l.b16 %v61
    %v479 = vunpack.c.h.b16 %v61
    %v480 = vunpack.c.l.b16 %v62
    %v481 = vunpack.c.h.b16 %v62
    %v482 = vunpack.c.l.b16 %v63
    %v483 = vunpack.c.h.b16 %v63
    %v484 = vunpack.c.l.b16 %v64
    %v485 = vunpack.c.h.b16 %v64
    %v486 = vunpack.c.l.b16 %v65
    %v487 = vunpack.c.h.b16 %v65
    %v488 = vunpack.c.l.b16 %v66
    %v489 = vunpack.c.h.b16 %v66
    %v490 = vunpack.c.l.b16 %v67
    %v491 = vunpack.c.h.b16 %v67
    %v492 = vunpack.c.l.b16 %v68
    %v493 = vunpack.c.h.b16 %v68
    %v494 = vunpack.c.l.b16 %v69
    %v495 = vunpack.c.h.b16 %v69
    %v496 = vunpack.c.l.b16 %v70
    %v497 = vunpack.c.h.b16 %v70
    %v498 = vunpack.c.l.b16 %v71
    %v499 = vunpack.c.h.b16 %v71
    %v500 = vunpack.c.l.b16 %v72
    %v501 = vunpack.c.h.b16 %v72
    %v502 = vunpack.c.l.b16 %v73
    %v503 = vunpack.c.h.b16 %v73
    %v504 = vunpack.c.l.b16 %v74
    %v505 = vunpack.c.h.b16 %v74
    %v506 = vunpack.c.l.b16 %v75
    %v507 = vunpack.c.h.b16 %v75
    %v508 = vunpack.c.l.b16 %v76
    %v509 = vunpack.c.h.b16 %v76
    %v510 = vunpack.c.l.b16 %v77
    %v511 = vunpack.c.h.b16 %v77
    %v512 = vunpack.c.l.b16 %v78
    %v513 = vunpack.c.h.b16 %v78
    %v514 = vunpack.c.l.b16 %v79
    %v515 = vunpack.c.h.b16 %v79
    %v516 = vunpack.c.l.b16 %v80
    %v517 = vunpack.c.h.b16 %v80
    %v518 = vunpack.c.l.b16 %v81
    %v519 = vunpack.c.h.b16 %v81
    %v520 = vunpack.c.l.b16 %v82
    %v521 = vunpack.c.h.b16 %v82
    %v522 = vunpack.c.l.b16 %v83
    %v523 = vunpack.c.h.b16 %v83
    %v524 = vunpack.c.l.b16 %v84
    %v525 = vunpack.c.h.b16 %v84
    %v526 = vunpack.c.l.b16 %v85
    %v527 = vunpack.c.h.b16 %v85
    %v528 = vunpack.c.l.b16 %v86
    %v529 = vunpack.c.h.b16 %v86
    %v530 = vunpack.c.l.b16 %v87
    %v531 = vunpack.c.h.b16 %v87
    %v532 = vunpack.c.l.b16 %v88
    %v533 = vunpack.c.h.b16 %v88
    %v534 = vunpack.c.l.b16 %v89
    %v535 = vunpack.c.h.b16 %v89
    %v536 = vunpack.c.l.b16 %v90
    %v537 = vunpack.c.h.b16 %v90
    %v538 = vunpack.c.l.b16 %v91
    %v539 = vunpack.c.h.b16 %v91
    %v540 = vunpack.c.l.b16 %v92
    %v541 = vunpack.c.h.b16 %v92
    %v542 = vunpack.c.l.b16 %v93
    %v543 = vunpack.c.h.b16 %v93
    %v544 = vunpack.c.l.b16 %v94
    %v545 = vunpack.c.h.b16 %v94
    %v546 = vunpack.c.l.b16 %v95
    %v547 = vunpack.c.h.b16 %v95
    %v548 = vunpack.c.l.b16 %v96
    %v549 = vunpack.c.h.b16 %v96
    %v550 = vunpack.c.l.b16 %v97
    %v551 = vunpack.c.h.b16 %v97
    %v552 = vunpack.c.l.b16 %v98
    %v553 = vunpack.c.h.b16 %v98
    %v554 = vunpack.c.l.b16 %v99
    %v555 = vunpack.c.h.b16 %v99
    %v556 = vunpack.c.l.b16 %v100
    %v557 = vunpack.c.h.b16 %v100
    %v558 = vunpack.c.l.b16 %v101
    %v559 = vunpack.c.h.b16 %v101
    %v560 = vunpack.c.l.b16 %v102
    %v561 = vunpack.c.h.b16 %v102
    %v562 = vunpack.c.l.b16 %v103
    %v563 = vunpack.c.h.b16 %v103
    %v564 = vunpack.c.l.b16 %v104
    %v565 = vunpack.c.h.b16 %v104
    %v566 = vunpack.c.l.b16 %v105
    %v567 = vunpack.c.h.b16 %v105
    %v568 = vunpack.c.l.b16 %v106
    %v569 = vunpack.c.h.b16 %v106
    %v570 = vunpack.c.l.b16 %v107
    %v571 = vunpack.c.h.b16 %v107
    %v572 = vunpack.c.l.b16 %v108
    %v573 = vunpack.c.h.b16 %v108
    %v574 = vunpack.c.l.b16 %v109
    %v575 = vunpack.c.h.b16 %v109
    %v576 = vunpack.c.l.b16 %v110
    %v577 = vunpack.c.h.b16 %v110
    %v578 = vunpack.c.l.b16 %v111
    %v579 = vunpack.c.h.b16 %v111
    %v580 = vunpack.c.l.b16 %v112
    %v581 = vunpack.c.h.b16 %v112
    %v582 = vunpack.c.l.b16 %v113
    %v583 = vunpack.c.h.b16 %v113
    %v584 = vunpack.c.l.b16 %v114
    %v585 = vunpack.c.h.b16 %v114
    %v586 = vunpack.c.l.b16 %v115
    %v587 = vunpack.c.h.b16 %v115
    %v588 = vunpack.c.l.b16 %v116
    %v589 = vunpack.c.h.b16 %v116
    %v590 = vunpack.c.l.b16 %v117
    %v591 = vunpack.c.h.b16 %v117
    %v592 = vunpack.c.l.b16 %v118
    %v593 = vunpack.c.h.b16 %v118
    %v594 = vunpack.c.l.b16 %v119
    %v595 = vunpack.c.h.b16 %v119
    %v596 = vunpack.c.l.b16 %v120
    %v597 = vunpack.c.h.b16 %v120
    %v598 = vunpack.c.l.b16 %v121
    %v599 = vunpack.c.h.b16 %v121
    %v600 = vunpack.c.l.b16 %v122
    %v601 = vunpack.c.h.b16 %v122
    %v602 = vunpack.c.l.b16 %v123
    %v603 = vunpack.c.h.b16 %v123
    %v604 = vunpack.c.l.b16 %v124
    %v605 = vunpack.c.h.b16 %v124
    %v606 = vunpack.c.l.b16 %v125
    %v607 = vunpack.c.h.b16 %v125
    %v608 = vunpack.c.l.b16 %v126
    %v609 = vunpack.c.h.b16 %v126
    %v610 = vunpack.c.l.b16 %v127
    %v611 = vunpack.c.h.b16 %v127
    %v612 = vunpack.c.l.b16 %v128
    %v613 = vunpack.c.h.b16 %v128
    %v614 = vunpack.c.l.b16 %v129
    %v615 = vunpack.c.h.b16 %v129
    %v616 = vunpack.c.l.b16 %v130
    %v617 = vunpack.c.h.b16 %v130
    %v618 = vunpack.c.l.b16 %v131
    %v619 = vunpack.c.h.b16 %v131
    %v620 = vunpack.c.l.b16 %v132
    %v621 = vunpack.c.h.b16 %v132
    %v622 = vunpack.c.l.b16 %v133
    %v623 = vunpack.c.h.b16 %v133
    %v624 = vunpack.c.l.b16 %v134
    %v625 = vunpack.c.h.b16 %v134
    %v626 = vunpack.c.l.b16 %v135
    %v627 = vunpack.c.h.b16 %v135
    %v628 = vunpack.c.l.b16 %v136
    %v629 = vunpack.c.h.b16 %v136
    %v630 = vunpack.c.l.b16 %v137
    %v631 = vunpack.c.h.b16 %v137
    %v632 = vunpack.c.l.b16 %v138
    %v633 = vunpack.c.h.b16 %v138
    %v634 = vunpack.c.l.b16 %v139
    %v635 = vunpack.c.h.b16 %v139
    %v636 = vunpack.c.l.b16 %v140
    %v637 = vunpack.c.h.b16 %v140
    %v638 = vunpack.c.l.b16 %v141
    %v639 = vunpack.c.h.b16 %v141
    %v640 = vunpack.c.l.b16 %v142
    %v641 = vunpack.c.h.b16 %v142
    %v642 = vunpack.c.l.b16 %v143
    %v643 = vunpack.c.h.b16 %v143
    %v644 = vunpack.c.l.b16 %v144
    %v645 = vunpack.c.h.b16 %v144
    %v646 = vunpack.c.l.b16 %v145
    %v647 = vunpack.c.h.b16 %v145
    %v648 = vunpack.c.l.b16 %v146
    %v649 = vunpack.c.h.b16 %v146
    %v650 = vunpack.c.l.b16 %v147
    %v651 = vunpack.c.h.b16 %v147
    %v652 = vunpack.c.l.b16 %v148
    %v653 = vunpack.c.h.b16 %v148
    %v654 = vunpack.c.l.b16 %v149
    %v655 = vunpack.c.h.b16 %v149
    %v656 = vunpack.c.l.b16 %v150
    %v657 = vunpack.c.h.b16 %v150
    %v658 = vunpack.c.l.b16 %v151
    %v659 = vunpack.c.h.b16 %v151
    %v660 = vunpack.c.l.b16 %v152
    %v661 = vunpack.c.h.b16 %v152
    %v662 = vunpack.c.l.b16 %v153
    %v663 = vunpack.c.h.b16 %v153
    %v664 = vunpack.c.l.b16 %v154
    %v665 = vunpack.c.h.b16 %v154
    %v666 = vunpack.c.l.b16 %v155
    %v667 = vunpack.c.h.b16 %v155
    %v668 = vunpack.c.l.b16 %v156
    %v669 = vunpack.c.h.b16 %v156
    %v670 = vunpack.c.l.b16 %v157
    %v671 = vunpack.c.h.b16 %v157
    %v672 = vunpack.c.l.b16 %v158
    %v673 = vunpack.c.h.b16 %v158
    %v674 = vunpack.c.l.b16 %v159
    %v675 = vunpack.c.h.b16 %v159
    %v676 = vunpack.c.l.b16 %v160
    %v677 = vunpack.c.h.b16 %v160
    %v678 = vunpack.c.l.b16 %v161
    %v679 = vunpack.c.h.b16 %v161
    %v680 = vunpack.c.l.b16 %v162
    %v681 = vunpack.c.h.b16 %v162
    %v682 = vunpack.c.l.b16 %v163
    %v683 = vunpack.c.h.b16 %v163
    %v684 = vunpack.c.l.b16 %v164
    %v685 = vunpack.c.h.b16 %v164
    %v686 = vunpack.c.l.b16 %v165
    %v687 = vunpack.c.h.b16 %v165
    %v688 = vunpack.c.l.b16 %v166
    %v689 = vunpack.c.h.b16 %v166
    %v690 = vunpack.c.l.b16 %v167
    %v691 = vunpack.c.h.b16 %v167
    %v692 = vunpack.c.l.b16 %v168
    %v693 = vunpack.c.h.b16 %v168
    %v694 = vunpack.c.l.b16 %v169
    %v695 = vunpack.c.h.b16 %v169
    %v696 = vunpack.c.l.b16 %v170
    %v697 = vunpack.c.h.b16 %v170
    %v698 = vunpack.c.l.b16 %v171
    %v699 = vunpack.c.h.b16 %v171
    %v700 = vunpack.c.l.b16 %v172
    %v701 = vunpack.c.h.b16 %v172
    %v702 = vunpack.c.l.b16 %v173
    %v703 = vunpack.c.h.b16 %v173
    %v704 = vunpack.c.l.b16 %v174
    %v705 = vunpack.c.h.b16 %v174
    %v706 = vunpack.c.l.b16 %v175
    %v707 = vunpack.c.h.b16 %v175
    %v708 = vunpack.c.l.b16 %v176
    %v709 = vunpack.c.h.b16 %v176
    %v710 = vunpack.c.l.b16 %v177
    %v711 = vunpack.c.h.b16 %v177
    %v712 = vunpack.c.l.b16 %v178
    %v713 = vunpack.c.h.b16 %v178
    %v714 = vunpack.c.l.b16 %v179
    %v715 = vunpack.c.h.b16 %v179
    %v716 = vunpack.c.l.b16 %v180
    %v717 = vunpack.c.h.b16 %v180
    %v718 = vunpack.c.l.b16 %v181
    %v719 = vunpack.c.h.b16 %v181
    %v720 = vunpack.c.l.b16 %v182
    %v721 = vunpack.c.h.b16 %v182
    %v722 = vunpack.c.l.b16 %v183
    %v723 = vunpack.c.h.b16 %v183
    %v724 = vunpack.c.l.b16 %v184
    %v725 = vunpack.c.h.b16 %v184
    %v726 = vunpack.c.l.b16 %v185
    %v727 = vunpack.c.h.b16 %v185
    %v728 = vunpack.c.l.b16 %v186
    %v729 = vunpack.c.h.b16 %v186
    %v730 = vunpack.c.l.b16 %v187
    %v731 = vunpack.c.h.b16 %v187
    %v732 = vunpack.c.l.b16 %v188
    %v733 = vunpack.c.h.b16 %v188
    %v734 = vunpack.c.l.b16 %v189
    %v735 = vunpack.c.h.b16 %v189
    %v736 = vunpack.c.l.b16 %v190
    %v737 = vunpack.c.h.b16 %v190
    %v738 = vunpack.c.l.b16 %v191
    %v739 = vunpack.c.h.b16 %v191
    %v740 = vunpack.c.l.b16 %v192
    %v741 = vunpack.c.h.b16 %v192
    %v742 = vunpack.c.l.b16 %v193
    %v743 = vunpack.c.h.b16 %v193
    %v744 = vunpack.c.l.b16 %v194
    %v745 = vunpack.c.h.b16 %v194
    %v746 = vunpack.c.l.b16 %v195
    %v747 = vunpack.c.h.b16 %v195
    %v748 = vunpack.c.l.b16 %v196
    %v749 = vunpack.c.h.b16 %v196
    %v750 = vunpack.c.l.b16 %v197
    %v751 = vunpack.c.h.b16 %v197
    %v752 = vunpack.c.l.b16 %v198
    %v753 = vunpack.c.h.b16 %v198
    %v754 = vunpack.c.l.b16 %v199
    %v755 = vunpack.c.h.b16 %v199
    %v756 = vunpack.c.l.b16 %v200
    %v757 = vunpack.c.h.b16 %v200
    %v758 = vunpack.c.l.b16 %v201
    %v759 = vunpack.c.h.b16 %v201
    %v760 = vunpack.c.l.b16 %v202
    %v761 = vunpack.c.h.b16 %v202
    %v762 = vunpack.c.l.b16 %v203
    %v763 = vunpack.c.h.b16 %v203
    %v764 = vunpack.c.l.b16 %v204
    %v765 = vunpack.c.h.b16 %v204
    %v766 = vunpack.c.l.b16 %v205
    %v767 = vunpack.c.h.b16 %v205
    %v768 = vunpack.c.l.b16 %v206
    %v769 = vunpack.c.h.b16 %v206
    %v770 = vunpack.c.l.b16 %v207
    %v771 = vunpack.c.h.b16 %v207
    %v772 = vunpack.c.l.b16 %v208
    %v773 = vunpack.c.h.b16 %v208
    %v774 = vunpack.c.l.b16 %v209
    %v775 = vunpack.c.h.b16 %v209
    %v776 = vunpack.c.l.b16 %v210
    %v777 = vunpack.c.h.b16 %v210
    %v778 = vunpack.c.l.b16 %v211
    %v779 = vunpack.c.h.b16 %v211
    %v780 = vunpack.c.l.b16 %v212
    %v781 = vunpack.c.h.b16 %v212
    %v782 = vunpack.c.l.b16 %v213
    %v783 = vunpack.c.h.b16 %v213
    %v784 = vunpack.c.l.b16 %v214
    %v785 = vunpack.c.h.b16 %v214
    %v786 = vunpack.c.l.b16 %v215
    %v787 = vunpack.c.h.b16 %v215
    %v788 = vunpack.c.l.b16 %v216
    %v789 = vunpack.c.h.b16 %v216
    %v790 = vunpack.c.l.b16 %v217
    %v791 = vunpack.c.h.b16 %v217
    %v792 = vunpack.c.l.b16 %v218
    %v793 = vunpack.c.h.b16 %v218
    %v794 = vunpack.c.l.b16 %v219
    %v795 = vunpack.c.h.b16 %v219
    %v796 = vunpack.c.l.b16 %v220
    %v797 = vunpack.c.h.b16 %v220
    %v798 = vunpack.c.l.b16 %v221
    %v799 = vunpack.c.h.b16 %v221
    %v800 = vunpack.c.l.b16 %v222
    %v801 = vunpack.c.h.b16 %v222
    %v802 = vunpack.c.l.b16 %v223
    %v803 = vunpack.c.h.b16 %v223
    %v804 = vunpack.c.l.b16 %v224
    %v805 = vunpack.c.h.b16 %v224
    %v806 = vunpack.c.l.b16 %v225
    %v807 = vunpack.c.h.b16 %v225
    %v808 = vunpack.c.l.b16 %v226
    %v809 = vunpack.c.h.b16 %v226
    %v810 = vunpack.c.l.b16 %v227
    %v811 = vunpack.c.h.b16 %v227
    %v812 = vunpack.c.l.b16 %v228
    %v813 = vunpack.c.h.b16 %v228
    %v814 = vunpack.c.l.b16 %v229
    %v815 = vunpack.c.h.b16 %v229
    %v816 = vunpack.c.l.b16 %v230
    %v817 = vunpack.c.h.b16 %v230
    %v818 = vunpack.c.l.b16 %v231
    %v819 = vunpack.c.h.b16 %v231
    %v820 = vunpack.c.l.b16 %v232
    %v821 = vunpack.c.h.b16 %v232
    %v822 = vunpack.c.l.b16 %v233
    %v823 = vunpack.c.h.b16 %v233
    %v824 = vunpack.c.l.b16 %v234
    %v825 = vunpack.c.h.b16 %v234
    %v826 = vunpack.c.l.b16 %v235
    %v827 = vunpack.c.h.b16 %v235
    %v828 = vunpack.c.l.b16 %v236
    %v829 = vunpack.c.h.b16 %v236
    %v830 = vunpack.c.l.b16 %v237
    %v831 = vunpack.c.h.b16 %v237
    %v832 = vunpack.c.l.b16 %v238
    %v833 = vunpack.c.h.b16 %v238
    %v834 = vunpack.c.l.b16 %v239
    %v835 = vunpack.c.h.b16 %v239
    %v836 = vunpack.c.l.b16 %v240
    %v837 = vunpack.c.h.b16 %v240
    %v838 = vunpack.c.l.b16 %v241
    %v839 = vunpack.c.h.b16 %v241
    %v840 = vunpack.c.l.b16 %v242
    %v841 = vunpack.c.h.b16 %v242
    %v842 = vunpack.c.l.b16 %v243
    %v843 = vunpack.c.h.b16 %v243
    %v844 = vunpack.c.l.b16 %v244
    %v845 = vunpack.c.h.b16 %v244
    %v846 = vunpack.c.l.b16 %v245
    %v847 = vunpack.c.h.b16 %v245
    %v848 = vunpack.c.l.b16 %v246
    %v849 = vunpack.c.h.b16 %v246
    %v850 = vunpack.c.l.b16 %v247
    %v851 = vunpack.c.h.b16 %v247
    %v852 = vunpack.c.l.b16 %v248
    %v853 = vunpack.c.h.b16 %v248
    %v854 = vunpack.c.l.b16 %v249
    %v855 = vunpack.c.h.b16 %v249
    %v856 = vunpack.c.l.b16 %v250
    %v857 = vunpack.c.h.b16 %v250
    %v858 = vunpack.c.l.b16 %v251
    %v859 = vunpack.c.h.b16 %v251
    %v860 = vunpack.c.l.b16 %v252
    %v861 = vunpack.c.h.b16 %v252
    %v862 = vunpack.c.l.b16 %v253
    %v863 = vunpack.c.h.b16 %v253
    %v864 = vpack.c.b16 %v476, %v472
    %v865 = vpack.c.b16 %v477, %v473
    %v866 = vpack.c.b16 %v478, %v474
    %v867 = vpack.c.b16 %v479, %v475
    %v868 = vpack.c.b16 %v484, %v480
    %v869 = vpack.c.b16 %v485, %v481
    %v870 = vpack.c.b16 %v486, %v482
    %v871 = vpack.c.b16 %v487, %v483
    %v872 = vpack.c.b16 %v492, %v488
    %v873 = vpack.c.b16 %v493, %v489
    %v874 = vpack.c.b16 %v494, %v490
    %v875 = vpack.c.b16 %v495, %v491
    %v876 = vpack.c.b16 %v500, %v496
    %v877 = vpack.c.b16 %v501, %v497
    %v878 = vpack.c.b16 %v502, %v498
    %v879 = vpack.c.b16 %v503, %v499
    %v880 = vpack.c.b16 %v508, %v504
    %v881 = vpack.c.b16 %v509, %v505
    %v882 = vpack.c.b16 %v510, %v506
    %v883 = vpack.c.b16 %v511, %v507
    %v884 = vpack.c.b16 %v516, %v512
    %v885 = vpack.c.b16 %v517, %v513
    %v886 = vpack.c.b16 %v518, %v514
    %v887 = vpack.c.b16 %v519, %v515
    %v888 = vpack.c.b16 %v524, %v520
    %v889 = vpack.c.b16 %v525, %v521
    %v890 = vpack.c.b16 %v526, %v522
    %v891 = vpack.c.b16 %v527, %v523
    %v892 = vpack.c.b16 %v532, %v528
    %v893 = vpack.c.b16 %v533, %v529
    %v894 = vpack.c.b16 %v534, %v530
    %v895 = vpack.c.b16 %v535, %v531
    %v896 = vpack.c.b16 %v540, %v536
    %v897 = vpack.c.b16 %v541, %v537
    %v898 = vpack.c.b16 %v542, %v538
    %v899 = vpack.c.b16 %v543, %v539
    %v900 = vpack.c.b16 %v548, %v544
    %v901 = vpack.c.b16 %v549, %v545
    %v902 = vpack.c.b16 %v550, %v546
    %v903 = vpack.c.b16 %v551, %v547
    %v904 = vpack.c.b16 %v556, %v552
    %v905 = vpack.c.b16 %v557, %v553
    %v906 = vpack.c.b16 %v558, %v554
    %v907 = vpack.c.b16 %v559, %v555
    %v908 = vpack.c.b16 %v564, %v560
    %v909 = vpack.c.b16 %v565, %v561
    %v910 = vpack.c.b16 %v566, %v562
    %v911 = vpack.c.b16 %v567, %v563
    %v912 = vpack.c.b16 %v572, %v568
    %v913 = vpack.c.b16 %v573, %v569
    %v914 = vpack.c.b16 %v574, %v570
    %v915 = vpack.c.b16 %v575, %v571
    %v916 = vpack.c.b16 %v580, %v576
    %v917 = vpack.c.b16 %v581, %v577
    %v918 = vpack.c.b16 %v582, %v578
    %v919 = vpack.c.b16 %v583, %v579
    %v920 = vpack.c.b16 %v588, %v584
    %v921 = vpack.c.b16 %v589, %v585
    %v922 = vpack.c.b16 %v590, %v586
    %v923 = vpack.c.b16 %v591, %v587
    %v924 = vpack.c.b16 %v596, %v592
    %v925 = vpack.c.b16 %v597, %v593
    %v926 = vpack.c.b16 %v598, %v594
    %v927 = vpack.c.b16 %v599, %v595
    %v928 = vpack.c.b16 %v604, %v600
    %v929 = vpack.c.b16 %v605, %v601
    %v930 = vpack.c.b16 %v606, %v602
    %v931 = vpack.c.b16 %v607, %v603
    %v932 = vpack.c.b16 %v612, %v608
    %v933 = vpack.c.b16 %v613, %v609
    %v934 = vpack.c.b16 %v614, %v610
    %v935 = vpack.c.b16 %v615, %v611
    %v936 = vpack.c.b16 %v620, %v616
    %v937 = vpack.c.b16 %v621, %v617
    %v938 = vpack.c.b16 %v622, %v618
    %v939 = vpack.c.b16 %v623, %v619
    %v940 = vpack.c.b16 %v628, %v624
    %v941 = vpack.c.b16 %v629, %v625
    %v942 = vpack.c.b16 %v630, %v626
    %v943 = vpack.c.b16 %v631, %v627
    %v944 = vpack.c.b16 %v636, %v632
    %v945 = vpack.c.b16 %v637, %v633
    %v946 = vpack.c.b16 %v638, %v634
    %v947 = vpack.c.b16 %v639, %v635
    %v948 = vpack.c.b16 %v644, %v640
    %v949 = vpack.c.b16 %v645, %v641
    %v950 = vpack.c.b16 %v646, %v642
    %v951 = vpack.c.b16 %v647, %v643
    %v952 = vpack.c.b16 %v652, %v648
    %v953 = vpack.c.b16 %v653, %v649
    %v954 = vpack.c.b16 %v654, %v650
    %v955 = vpack.c.b16 %v655, %v651
    %v956 = vpack.c.b16 %v660, %v656
    %v957 = vpack.c.b16 %v661, %v657
    %v958 = vpack.c.b16 %v662, %v658
    %v959 = vpack.c.b16 %v663, %v659
    %v960 = vpack.c.b16 %v668, %v664
    %v961 = vpack.c.b16 %v669, %v665
    %v962 = vpack.c.b16 %v670, %v666
    %v963 = vpack.c.b16 %v671, %v667
    %v964 = vpack.c.b16 %v676, %v672
    %v965 = vpack.c.b16 %v677, %v673
    %v966 = vpack.c.b16 %v678, %v674
    %v967 = vpack.c.b16 %v679, %v675
    %v968 = vpack.c.b16 %v684, %v680
    %v969 = vpack.c.b16 %v685, %v681
    %v970 = vpack.c.b16 %v686, %v682
    %v971 = vpack.c.b16 %v687, %v683
    %v972 = vpack.c.b16 %v692, %v688
    %v973 = vpack.c.b16 %v693, %v689
    %v974 = vpack.c.b16 %v694, %v690
    %v975 = vpack.c.b16 %v695, %v691
    %v976 = vpack.c.b16 %v700, %v696
    %v977 = vpack.c.b16 %v701, %v697
    %v978 = vpack.c.b16 %v702, %v698
    %v979 = vpack.c.b16 %v703, %v699
    %v980 = vpack.c.b16 %v708, %v704
    %v981 = vpack.c.b16 %v709, %v705
    %v982 = vpack.c.b16 %v710, %v706
    %v983 = vpack.c.b16 %v711, %v707
    %v984 = vpack.c.b16 %v716, %v712
    %v985 = vpack.c.b16 %v717, %v713
    %v986 = vpack.c.b16 %v718, %v714
    %v987 = vpack.c.b16 %v719, %v715
    %v988 = vpack.c.b16 %v724, %v720
    %v989 = vpack.c.b16 %v725, %v721
    %v990 = vpack.c.b16 %v726, %v722
    %v991 = vpack.c.b16 %v727, %v723
    %v992 = vpack.c.b16 %v732, %v728
    %v993 = vpack.c.b16 %v733, %v729
    %v994 = vpack.c.b16 %v734, %v730
    %v995 = vpack.c.b16 %v735, %v731
    %v996 = vpack.c.b16 %v740, %v736
    %v997 = vpack.c.b16 %v741, %v737
    %v998 = vpack.c.b16 %v742, %v738
    %v999 = vpack.c.b16 %v743, %v739
    %v1000 = vpack.c.b16 %v748, %v744
    %v1001 = vpack.c.b16 %v749, %v745
    %v1002 = vpack.c.b16 %v750, %v746
    %v1003 = vpack.c.b16 %v751, %v747
    %v1004 = vpack.c.b16 %v756, %v752
    %v1005 = vpack.c.b16 %v757, %v753
    %v1006 = vpack.c.b16 %v758, %v754
    %v1007 = vpack.c.b16 %v759, %v755
    %v1008 = vpack.c.b16 %v764, %v760
    %v1009 = vpack.c.b16 %v765, %v761
    %v1010 = vpack.c.b16 %v766, %v762
    %v1011 = vpack.c.b16 %v767, %v763
    %v1012 = vpack.c.b16 %v772, %v768
    %v1013 = vpack.c.b16 %v773, %v769
    %v1014 = vpack.c.b16 %v774, %v770
    %v1015 = vpack.c.b16 %v775, %v771
    %v1016 = vpack.c.b16 %v780, %v776
    %v1017 = vpack.c.b16 %v781, %v777
    %v1018 = vpack.c.b16 %v782, %v778
    %v1019 = vpack.c.b16 %v783, %v779
    %v1020 = vpack.c.b16 %v788, %v784
    %v1021 = vpack.c.b16 %v789, %v785
    %v1022 = vpack.c.b16 %v790, %v786
    %v1023 = vpack.c.b16 %v791, %v787
    %v1024 = vpack.c.b16 %v796, %v792
    %v1025 = vpack.c.b16 %v797, %v793
    %v1026 = vpack.c.b16 %v798, %v794
    %v1027 = vpack.c.b16 %v799, %v795
    %v1028 = vpack.c.b16 %v804, %v800
    %v1029 = vpack.c.b16 %v805, %v801
    %v1030 = vpack.c.b16 %v806, %v802
    %v1031 = vpack.c.b16 %v807, %v803
    %v1032 = vpack.c.b16 %v812, %v808
    %v1033 = vpack.c.b16 %v813, %v809
    %v1034 = vpack.c.b16 %v814, %v810
    %v1035 = vpack.c.b16 %v815, %v811
    %v1036 = vpack.c.b16 %v820, %v816
    %v1037 = vpack.c.b16 %v821, %v817
    %v1038 = vpack.c.b16 %v822, %v818
    %v1039 = vpack.c.b16 %v823, %v819
    %v1040 = vpack.c.b16 %v828, %v824
    %v1041 = vpack.c.b16 %v829, %v825
    %v1042 = vpack.c.b16 %v830, %v826
    %v1043 = vpack.c.b16 %v831, %v827
    %v1044 = vpack.c.b16 %v836, %v832
    %v1045 = vpack.c.b16 %v837, %v833
    %v1046 = vpack.c.b16 %v838, %v834
    %v1047 = vpack.c.b16 %v839, %v835
    %v1048 = vpack.c.b16 %v844, %v840
    %v1049 = vpack.c.b16 %v845, %v841
    %v1050 = vpack.c.b16 %v846, %v842
    %v1051 = vpack.c.b16 %v847, %v843
    %v1052 = vpack.c.b16 %v852, %v848
    %v1053 = vpack.c.b16 %v853, %v849
    %v1054 = vpack.c.b16 %v854, %v850
    %v1055 = vpack.c.b16 %v855, %v851
    %v1056 = vpack.c.b16 %v860, %v856
    %v1057 = vpack.c.b16 %v861, %v857
    %v1058 = vpack.c.b16 %v862, %v858
    %v1059 = vpack.c.b16 %v863, %v859
    %vm1256 = vcmask 130048
    %v1258 = vsel %vm1256, %v57, 0
    %1260 = vmatprep.subr.bf16.mxu0 %v893
    %1261 = vmatpush1.bf16.msra.mxu0 %v892
    %1262 = vmatprep.subr.bf16.mxu0 %v889
    %1263 = vmatpush1.bf16.msra.mxu0 %v888
    %1264 = vmatprep.subr.bf16.mxu0 %v885
    %1265 = vmatpush1.bf16.msra.mxu0 %v884
    %1266 = vmatprep.subr.bf16.mxu0 %v881
    %1267 = vmatpush1.bf16.msra.mxu0 %v880
    %1268 = vmatprep.subr.bf16.mxu0 %v877
    %1269 = vmatpush1.bf16.msra.mxu0 %v876
    %1270 = vmatprep.subr.bf16.mxu0 %v873
    %1271 = vmatpush1.bf16.msra.mxu0 %v872
    %1272 = vmatprep.subr.bf16.mxu0 %v869
    %1273 = vmatpush1.bf16.msra.mxu0 %v868
    %1274 = vmatprep.subr.bf16.mxu0 %v865
    %1275 = vmatpush1.bf16.msra.mxu0 %v864
    %1276 = vmatprep.subr.bf16.mxu0 %v925
    %1277 = vmatpush2.bf16.msra.mxu0 %v924
    %1278 = vmatprep.subr.bf16.mxu0 %v921
    %1279 = vmatpush2.bf16.msra.mxu0 %v920
    %1280 = vmatprep.subr.bf16.mxu0 %v917
    %1281 = vmatpush2.bf16.msra.mxu0 %v916
    %1282 = vmatprep.subr.bf16.mxu0 %v913
    %1283 = vmatpush2.bf16.msra.mxu0 %v912
    %1284 = vmatprep.subr.bf16.mxu0 %v909
    %1285 = vmatpush2.bf16.msra.mxu0 %v908
    %1286 = vmatprep.subr.bf16.mxu0 %v905
    %1287 = vmatpush2.bf16.msra.mxu0 %v904
    %1288 = vmatprep.subr.bf16.mxu0 %v901
    %1289 = vmatpush2.bf16.msra.mxu0 %v900
    %1290 = vmatprep.subr.bf16.mxu0 %v897
    %1291 = vmatpush2.bf16.msra.mxu0 %v896
    %1292 = vmatprep.mubr.bf16.mxu0 %v52
    %1293 = vmatmul.mubr.bf16.gmra.mxu0 %v51
    %v1294 = vpop.f32.mrf.mxu0
    %v1295 = vadd.f32 %v259, %v1294
    %v1296 = vpop.f32.mrf.mxu0
    %v1297 = vadd.f32 %v263, %v1296
    %v1298 = vpop.f32.mrf.mxu0
    %v1299 = vadd.f32 %v259, %v1298
    %v1300 = vpop.f32.mrf.mxu0
    %v1301 = vadd.f32 %v263, %v1300
    %1302 = vdwg.mxu0
    %1303 = vmatprep.subr.bf16.mxu0 %v957
    %1304 = vmatpush1.bf16.msra.mxu0 %v956
    %1305 = vmatprep.subr.bf16.mxu0 %v953
    %1306 = vmatpush1.bf16.msra.mxu0 %v952
    %1307 = vmatprep.subr.bf16.mxu0 %v949
    %1308 = vmatpush1.bf16.msra.mxu0 %v948
    %1309 = vmatprep.subr.bf16.mxu0 %v945
    %1310 = vmatpush1.bf16.msra.mxu0 %v944
    %1311 = vmatprep.subr.bf16.mxu0 %v941
    %1312 = vmatpush1.bf16.msra.mxu0 %v940
    %1313 = vmatprep.subr.bf16.mxu0 %v937
    %1314 = vmatpush1.bf16.msra.mxu0 %v936
    %1315 = vmatprep.subr.bf16.mxu0 %v933
    %1316 = vmatpush1.bf16.msra.mxu0 %v932
    %1317 = vmatprep.subr.bf16.mxu0 %v929
    %1318 = vmatpush1.bf16.msra.mxu0 %v928
    %1319 = vmatprep.subr.bf16.mxu0 %v989
    %1320 = vmatpush2.bf16.msra.mxu0 %v988
    %1321 = vmatprep.subr.bf16.mxu0 %v985
    %1322 = vmatpush2.bf16.msra.mxu0 %v984
    %1323 = vmatprep.subr.bf16.mxu0 %v981
    %1324 = vmatpush2.bf16.msra.mxu0 %v980
    %1325 = vmatprep.subr.bf16.mxu0 %v977
    %1326 = vmatpush2.bf16.msra.mxu0 %v976
    %1327 = vmatprep.subr.bf16.mxu0 %v973
    %1328 = vmatpush2.bf16.msra.mxu0 %v972
    %1329 = vmatprep.subr.bf16.mxu0 %v969
    %1330 = vmatpush2.bf16.msra.mxu0 %v968
    %1331 = vmatprep.subr.bf16.mxu0 %v965
    %1332 = vmatpush2.bf16.msra.mxu0 %v964
    %1333 = vmatprep.subr.bf16.mxu0 %v961
    %1334 = vmatpush2.bf16.msra.mxu0 %v960
    %1335 = vmatprep.mubr.bf16.mxu0 %v54
    %1336 = vmatmul.mubr.bf16.gmra.mxu0 %v53
    %v1337 = vpop.f32.mrf.mxu0
    %v1338 = vadd.f32 %v1295, %v1337
    %v1339 = vpop.f32.mrf.mxu0
    %v1340 = vadd.f32 %v1297, %v1339
    %v1341 = vpop.f32.mrf.mxu0
    %v1342 = vadd.f32 %v1299, %v1341
    %v1343 = vpop.f32.mrf.mxu0
    %v1344 = vadd.f32 %v1301, %v1343
    %1345 = vdwg.mxu0
    %1346 = vmatprep.subr.bf16.mxu0 %v1021
    %1347 = vmatpush1.bf16.msra.mxu0 %v1020
    %1348 = vmatprep.subr.bf16.mxu0 %v1017
    %1349 = vmatpush1.bf16.msra.mxu0 %v1016
    %1350 = vmatprep.subr.bf16.mxu0 %v1013
    %1351 = vmatpush1.bf16.msra.mxu0 %v1012
    %1352 = vmatprep.subr.bf16.mxu0 %v1009
    %1353 = vmatpush1.bf16.msra.mxu0 %v1008
    %1354 = vmatprep.subr.bf16.mxu0 %v1005
    %1355 = vmatpush1.bf16.msra.mxu0 %v1004
    %1356 = vmatprep.subr.bf16.mxu0 %v1001
    %1357 = vmatpush1.bf16.msra.mxu0 %v1000
    %1358 = vmatprep.subr.bf16.mxu0 %v997
    %1359 = vmatpush1.bf16.msra.mxu0 %v996
    %1360 = vmatprep.subr.bf16.mxu0 %v993
    %1361 = vmatpush1.bf16.msra.mxu0 %v992
    %1362 = vmatprep.subr.bf16.mxu0 %v1053
    %1363 = vmatpush2.bf16.msra.mxu0 %v1052
    %1364 = vmatprep.subr.bf16.mxu0 %v1049
    %1365 = vmatpush2.bf16.msra.mxu0 %v1048
    %1366 = vmatprep.subr.bf16.mxu0 %v1045
    %1367 = vmatpush2.bf16.msra.mxu0 %v1044
    %1368 = vmatprep.subr.bf16.mxu0 %v1041
    %1369 = vmatpush2.bf16.msra.mxu0 %v1040
    %1370 = vmatprep.subr.bf16.mxu0 %v1037
    %1371 = vmatpush2.bf16.msra.mxu0 %v1036
    %1372 = vmatprep.subr.bf16.mxu0 %v1033
    %1373 = vmatpush2.bf16.msra.mxu0 %v1032
    %1374 = vmatprep.subr.bf16.mxu0 %v1029
    %1375 = vmatpush2.bf16.msra.mxu0 %v1028
    %1376 = vmatprep.subr.bf16.mxu0 %v1025
    %1377 = vmatpush2.bf16.msra.mxu0 %v1024
    %1378 = vmatprep.mubr.bf16.mxu0 %v56
    %1379 = vmatmul.mubr.bf16.gmra.mxu0 %v55
    %v1380 = vpop.f32.mrf.mxu0
    %v1381 = vadd.f32 %v1338, %v1380
    %v1382 = vpop.f32.mrf.mxu0
    %v1383 = vadd.f32 %v1340, %v1382
    %v1384 = vpop.f32.mrf.mxu0
    %v1385 = vadd.f32 %v1342, %v1384
    %v1386 = vpop.f32.mrf.mxu0
    %v1387 = vadd.f32 %v1344, %v1386
    %1388 = vdwg.mxu0
    %1389 = vmatprep.subr.bf16.mxu0 0
    %1390 = vmatpush1.bf16.msra.mxu0 0
    %1391 = vmatprep.subr.bf16.mxu0 0
    %1392 = vmatpush1.bf16.msra.mxu0 0
    %1393 = vmatprep.subr.bf16.mxu0 0
    %1394 = vmatpush1.bf16.msra.mxu0 0
    %1395 = vmatprep.subr.bf16.mxu0 0
    %1396 = vmatpush1.bf16.msra.mxu0 0
    %1397 = vmatprep.subr.bf16.mxu0 0
    %1398 = vmatpush1.bf16.msra.mxu0 0
    %1399 = vmatprep.subr.bf16.mxu0 0
    %1400 = vmatpush1.bf16.msra.mxu0 0
    %1401 = vmatprep.subr.bf16.mxu0 0
    %1402 = vmatpush1.bf16.msra.mxu0 0
    %1403 = vmatprep.subr.bf16.mxu0 %v1057
    %1404 = vmatpush1.bf16.msra.mxu0 %v1056
    %1405 = vmatprep.subr.bf16.mxu0 0
    %1406 = vmatpush2.bf16.msra.mxu0 0
    %1407 = vmatprep.subr.bf16.mxu0 0
    %1408 = vmatpush2.bf16.msra.mxu0 0
    %1409 = vmatprep.subr.bf16.mxu0 0
    %1410 = vmatpush2.bf16.msra.mxu0 0
    %1411 = vmatprep.subr.bf16.mxu0 0
    %1412 = vmatpush2.bf16.msra.mxu0 0
    %1413 = vmatprep.subr.bf16.mxu0 0
    %1414 = vmatpush2.bf16.msra.mxu0 0
    %1415 = vmatprep.subr.bf16.mxu0 0
    %1416 = vmatpush2.bf16.msra.mxu0 0
    %1417 = vmatprep.subr.bf16.mxu0 0
    %1418 = vmatpush2.bf16.msra.mxu0 0
    %1419 = vmatprep.subr.bf16.mxu0 0
    %1420 = vmatpush2.bf16.msra.mxu0 0
    %1421 = vmatprep.mubr.bf16.mxu0 0
    %1422 = vmatmul.mubr.bf16.gmra.mxu0 %v1258
    %v1423 = vpop.f32.mrf.mxu0
    %v1424 = vadd.f32 %v1381, %v1423
    %v1425 = vpop.f32.mrf.mxu0
    %v1426 = vadd.f32 %v1383, %v1425
    %v1427 = vpop.f32.mrf.mxu0
    %v1428 = vadd.f32 %v1385, %v1427
    %v1429 = vpop.f32.mrf.mxu0
    %v1430 = vadd.f32 %v1387, %v1429
    %1431 = vdwg.mxu0
    %1432 = vmatprep.subr.bf16.mxu0 %v895
    %1433 = vmatpush1.bf16.msra.mxu0 %v894
    %1434 = vmatprep.subr.bf16.mxu0 %v891
    %1435 = vmatpush1.bf16.msra.mxu0 %v890
    %1436 = vmatprep.subr.bf16.mxu0 %v887
    %1437 = vmatpush1.bf16.msra.mxu0 %v886
    %1438 = vmatprep.subr.bf16.mxu0 %v883
    %1439 = vmatpush1.bf16.msra.mxu0 %v882
    %1440 = vmatprep.subr.bf16.mxu0 %v879
    %1441 = vmatpush1.bf16.msra.mxu0 %v878
    %1442 = vmatprep.subr.bf16.mxu0 %v875
    %1443 = vmatpush1.bf16.msra.mxu0 %v874
    %1444 = vmatprep.subr.bf16.mxu0 %v871
    %1445 = vmatpush1.bf16.msra.mxu0 %v870
    %1446 = vmatprep.subr.bf16.mxu0 %v867
    %1447 = vmatpush1.bf16.msra.mxu0 %v866
    %1448 = vmatprep.subr.bf16.mxu0 %v927
    %1449 = vmatpush2.bf16.msra.mxu0 %v926
    %1450 = vmatprep.subr.bf16.mxu0 %v923
    %1451 = vmatpush2.bf16.msra.mxu0 %v922
    %1452 = vmatprep.subr.bf16.mxu0 %v919
    %1453 = vmatpush2.bf16.msra.mxu0 %v918
    %1454 = vmatprep.subr.bf16.mxu0 %v915
    %1455 = vmatpush2.bf16.msra.mxu0 %v914
    %1456 = vmatprep.subr.bf16.mxu0 %v911
    %1457 = vmatpush2.bf16.msra.mxu0 %v910
    %1458 = vmatprep.subr.bf16.mxu0 %v907
    %1459 = vmatpush2.bf16.msra.mxu0 %v906
    %1460 = vmatprep.subr.bf16.mxu0 %v903
    %1461 = vmatpush2.bf16.msra.mxu0 %v902
    %1462 = vmatprep.subr.bf16.mxu0 %v899
    %1463 = vmatpush2.bf16.msra.mxu0 %v898
    %1464 = vmatprep.mubr.bf16.mxu0 %v52
    %1465 = vmatmul.mubr.bf16.gmra.mxu0 %v51
    %v1466 = vpop.f32.mrf.mxu0
    %v1467 = vadd.f32 %v267, %v1466
    %v1468 = vpop.f32.mrf.mxu0
    %v1469 = vadd.f32 %v271, %v1468
    %v1470 = vpop.f32.mrf.mxu0
    %v1471 = vadd.f32 %v267, %v1470
    %v1472 = vpop.f32.mrf.mxu0
    %v1473 = vadd.f32 %v271, %v1472
    %1474 = vdwg.mxu0
    %1475 = vmatprep.subr.bf16.mxu0 %v959
    %1476 = vmatpush1.bf16.msra.mxu0 %v958
    %1477 = vmatprep.subr.bf16.mxu0 %v955
    %1478 = vmatpush1.bf16.msra.mxu0 %v954
    %1479 = vmatprep.subr.bf16.mxu0 %v951
    %1480 = vmatpush1.bf16.msra.mxu0 %v950
    %1481 = vmatprep.subr.bf16.mxu0 %v947
    %1482 = vmatpush1.bf16.msra.mxu0 %v946
    %1483 = vmatprep.subr.bf16.mxu0 %v943
    %1484 = vmatpush1.bf16.msra.mxu0 %v942
    %1485 = vmatprep.subr.bf16.mxu0 %v939
    %1486 = vmatpush1.bf16.msra.mxu0 %v938
    %1487 = vmatprep.subr.bf16.mxu0 %v935
    %1488 = vmatpush1.bf16.msra.mxu0 %v934
    %1489 = vmatprep.subr.bf16.mxu0 %v931
    %1490 = vmatpush1.bf16.msra.mxu0 %v930
    %1491 = vmatprep.subr.bf16.mxu0 %v991
    %1492 = vmatpush2.bf16.msra.mxu0 %v990
    %1493 = vmatprep.subr.bf16.mxu0 %v987
    %1494 = vmatpush2.bf16.msra.mxu0 %v986
    %1495 = vmatprep.subr.bf16.mxu0 %v983
    %1496 = vmatpush2.bf16.msra.mxu0 %v982
    %1497 = vmatprep.subr.bf16.mxu0 %v979
    %1498 = vmatpush2.bf16.msra.mxu0 %v978
    %1499 = vmatprep.subr.bf16.mxu0 %v975
    %1500 = vmatpush2.bf16.msra.mxu0 %v974
    %1501 = vmatprep.subr.bf16.mxu0 %v971
    %1502 = vmatpush2.bf16.msra.mxu0 %v970
    %1503 = vmatprep.subr.bf16.mxu0 %v967
    %1504 = vmatpush2.bf16.msra.mxu0 %v966
    %1505 = vmatprep.subr.bf16.mxu0 %v963
    %1506 = vmatpush2.bf16.msra.mxu0 %v962
    %1507 = vmatprep.mubr.bf16.mxu0 %v54
    %1508 = vmatmul.mubr.bf16.gmra.mxu0 %v53
    %v1509 = vpop.f32.mrf.mxu0
    %v1510 = vadd.f32 %v1467, %v1509
    %v1511 = vpop.f32.mrf.mxu0
    %v1512 = vadd.f32 %v1469, %v1511
    %v1513 = vpop.f32.mrf.mxu0
    %v1514 = vadd.f32 %v1471, %v1513
    %v1515 = vpop.f32.mrf.mxu0
    %v1516 = vadd.f32 %v1473, %v1515
    %1517 = vdwg.mxu0
    %1518 = vmatprep.subr.bf16.mxu0 %v1023
    %1519 = vmatpush1.bf16.msra.mxu0 %v1022
    %1520 = vmatprep.subr.bf16.mxu0 %v1019
    %1521 = vmatpush1.bf16.msra.mxu0 %v1018
    %1522 = vmatprep.subr.bf16.mxu0 %v1015
    %1523 = vmatpush1.bf16.msra.mxu0 %v1014
    %1524 = vmatprep.subr.bf16.mxu0 %v1011
    %1525 = vmatpush1.bf16.msra.mxu0 %v1010
    %1526 = vmatprep.subr.bf16.mxu0 %v1007
    %1527 = vmatpush1.bf16.msra.mxu0 %v1006
    %1528 = vmatprep.subr.bf16.mxu0 %v1003
    %1529 = vmatpush1.bf16.msra.mxu0 %v1002
    %1530 = vmatprep.subr.bf16.mxu0 %v999
    %1531 = vmatpush1.bf16.msra.mxu0 %v998
    %1532 = vmatprep.subr.bf16.mxu0 %v995
    %1533 = vmatpush1.bf16.msra.mxu0 %v994
    %1534 = vmatprep.subr.bf16.mxu0 %v1055
    %1535 = vmatpush2.bf16.msra.mxu0 %v1054
    %1536 = vmatprep.subr.bf16.mxu0 %v1051
    %1537 = vmatpush2.bf16.msra.mxu0 %v1050
    %1538 = vmatprep.subr.bf16.mxu0 %v1047
    %1539 = vmatpush2.bf16.msra.mxu0 %v1046
    %1540 = vmatprep.subr.bf16.mxu0 %v1043
    %1541 = vmatpush2.bf16.msra.mxu0 %v1042
    %1542 = vmatprep.subr.bf16.mxu0 %v1039
    %1543 = vmatpush2.bf16.msra.mxu0 %v1038
    %1544 = vmatprep.subr.bf16.mxu0 %v1035
    %1545 = vmatpush2.bf16.msra.mxu0 %v1034
    %1546 = vmatprep.subr.bf16.mxu0 %v1031
    %1547 = vmatpush2.bf16.msra.mxu0 %v1030
    %1548 = vmatprep.subr.bf16.mxu0 %v1027
    %1549 = vmatpush2.bf16.msra.mxu0 %v1026
    %1550 = vmatprep.mubr.bf16.mxu0 %v56
    %1551 = vmatmul.mubr.bf16.gmra.mxu0 %v55
    %v1552 = vpop.f32.mrf.mxu0
    %v1553 = vadd.f32 %v1510, %v1552
    %v1554 = vpop.f32.mrf.mxu0
    %v1555 = vadd.f32 %v1512, %v1554
    %v1556 = vpop.f32.mrf.mxu0
    %v1557 = vadd.f32 %v1514, %v1556
    %v1558 = vpop.f32.mrf.mxu0
    %v1559 = vadd.f32 %v1516, %v1558
    %1560 = vdwg.mxu0
    %1561 = vmatprep.subr.bf16.mxu0 0
    %1562 = vmatpush1.bf16.msra.mxu0 0
    %1563 = vmatprep.subr.bf16.mxu0 0
    %1564 = vmatpush1.bf16.msra.mxu0 0
    %1565 = vmatprep.subr.bf16.mxu0 0
    %1566 = vmatpush1.bf16.msra.mxu0 0
    %1567 = vmatprep.subr.bf16.mxu0 0
    %1568 = vmatpush1.bf16.msra.mxu0 0
    %1569 = vmatprep.subr.bf16.mxu0 0
    %1570 = vmatpush1.bf16.msra.mxu0 0
    %1571 = vmatprep.subr.bf16.mxu0 0
    %1572 = vmatpush1.bf16.msra.mxu0 0
    %1573 = vmatprep.subr.bf16.mxu0 0
    %1574 = vmatpush1.bf16.msra.mxu0 0
    %1575 = vmatprep.subr.bf16.mxu0 %v1059
    %1576 = vmatpush1.bf16.msra.mxu0 %v1058
    %1577 = vmatprep.subr.bf16.mxu0 0
    %1578 = vmatpush2.bf16.msra.mxu0 0
    %1579 = vmatprep.subr.bf16.mxu0 0
    %1580 = vmatpush2.bf16.msra.mxu0 0
    %1581 = vmatprep.subr.bf16.mxu0 0
    %1582 = vmatpush2.bf16.msra.mxu0 0
    %1583 = vmatprep.subr.bf16.mxu0 0
    %1584 = vmatpush2.bf16.msra.mxu0 0
    %1585 = vmatprep.subr.bf16.mxu0 0
    %1586 = vmatpush2.bf16.msra.mxu0 0
    %1587 = vmatprep.subr.bf16.mxu0 0
    %1588 = vmatpush2.bf16.msra.mxu0 0
    %1589 = vmatprep.subr.bf16.mxu0 0
    %1590 = vmatpush2.bf16.msra.mxu0 0
    %1591 = vmatprep.subr.bf16.mxu0 0
    %1592 = vmatpush2.bf16.msra.mxu0 0
    %1593 = vmatprep.mubr.bf16.mxu0 0
    %1594 = vmatmul.mubr.bf16.gmra.mxu0 %v1258
    %v1595 = vpop.f32.mrf.mxu0
    %v1596 = vadd.f32 %v1553, %v1595
    %v1597 = vpop.f32.mrf.mxu0
    %v1598 = vadd.f32 %v1555, %v1597
    %v1599 = vpop.f32.mrf.mxu0
    %v1600 = vadd.f32 %v1557, %v1599
    %v1601 = vpop.f32.mrf.mxu0
    %v1602 = vadd.f32 %v1559, %v1601
    %1603 = vdwg.mxu0
    %v1604 = vmul.f32 %v1424, 0.2
    %v1605 = vmul.f32 %v1426, 0.2
    %v1606 = vmul.f32 %v1596, 0.2
    %v1607 = vmul.f32 %v1598, 0.2
    %v1608 = vmul.f32 %v1428, 0.2
    %v1609 = vmul.f32 %v1430, 0.2
    %v1610 = vmul.f32 %v1600, 0.2
    %v1611 = vmul.f32 %v1602, 0.2
    %v1612 = vmax.f32 %v1424, %v1604
    %v1613 = vmax.f32 %v1426, %v1605
    %v1614 = vmax.f32 %v1596, %v1606
    %v1615 = vmax.f32 %v1598, %v1607
    %v1616 = vmax.f32 %v1428, %v1608
    %v1617 = vmax.f32 %v1430, %v1609
    %v1618 = vmax.f32 %v1600, %v1610
    %v1619 = vmax.f32 %v1602, %v1611
    %v1620 = vpack.c.bf16 %v1616, %v1612
    %v1621 = vpack.c.bf16 %v1617, %v1613
    %v1622 = vpack.c.bf16 %v1618, %v1614
    %v1623 = vpack.c.bf16 %v1619, %v1615
    %v1624 = vld [vmem:[%s3] sm:$0xf]
    %v1625 = vld [vmem:[%s3 + $0x4] sm:$0xf]
    %v1626 = vld [vmem:[%s3 + $0x8] sm:$0xf]
    %v1627 = vld [vmem:[%s3 + $0xc] sm:$0xf]
    %v1628 = vld [vmem:[%s3 + $0x10] sm:$0xf]
    %v1629 = vld [vmem:[%s3 + $0x14] sm:$0xf]
    %v1630 = vld [vmem:[%s3 + $0x18] sm:$0xf]
    %v1631 = vld [vmem:[%s3 + $0x1c] sm:$0xf]
    %v1632 = vld [vmem:[%s3 + $0x20] sm:$0xf]
    %v1633 = vld [vmem:[%s3 + $0x24] sm:$0xf]
    %v1634 = vld [vmem:[%s3 + $0x28] sm:$0xf]
    %v1635 = vld [vmem:[%s3 + $0x2c] sm:$0xf]
    %v1636 = vld [vmem:[%s3 + $0x30] sm:$0xf]
    %v1637 = vld [vmem:[%s3 + $0x34] sm:$0xf]
    %v1638 = vld [vmem:[%s3 + $0x38] sm:$0xf]
    %v1639 = vld [vmem:[%s3 + $0x3c] sm:$0xf]
    %v1640 = vld [vmem:[%s3 + $0x40] sm:$0xf]
    %v1641 = vld [vmem:[%s3 + $0x44] sm:$0xf]
    %v1642 = vld [vmem:[%s3 + $0x48] sm:$0xf]
    %v1643 = vld [vmem:[%s3 + $0x4c] sm:$0xf]
    %v1644 = vld [vmem:[%s3 + $0x50] sm:$0xf]
    %v1645 = vld [vmem:[%s3 + $0x54] sm:$0xf]
    %v1646 = vld [vmem:[%s3 + $0x58] sm:$0xf]
    %v1647 = vld [vmem:[%s3 + $0x5c] sm:$0xf]
    %v1648 = vld [vmem:[%s3 + $0x60] sm:$0xf]
    %v1649 = vld [vmem:[%s3 + $0x64] sm:$0xf]
    %v1650 = vld [vmem:[%s3 + $0x68] sm:$0xf]
    %v1651 = vld [vmem:[%s3 + $0x6c] sm:$0xf]
    %v1652 = vld [vmem:[%s3 + $0x70] sm:$0xf]
    %v1653 = vld [vmem:[%s3 + $0x74] sm:$0xf]
    %v1654 = vld [vmem:[%s3 + $0x78] sm:$0xf]
    %v1655 = vld [vmem:[%s3 + $0x7c] sm:$0xf]
    %v1656 = vld [vmem:[%s3 + $0x80] sm:$0xf]
    %v1657 = vld [vmem:[%s3 + $0x84] sm:$0xf]
    %v1658 = vld [vmem:[%s3 + $0x88] sm:$0xf]
    %v1659 = vld [vmem:[%s3 + $0x8c] sm:$0xf]
    %v1660 = vld [vmem:[%s3 + $0x90] sm:$0xf]
    %v1661 = vld [vmem:[%s3 + $0x94] sm:$0xf]
    %v1662 = vld [vmem:[%s3 + $0x98] sm:$0xf]
    %v1663 = vld [vmem:[%s3 + $0x9c] sm:$0xf]
    %v1664 = vld [vmem:[%s3 + $0xa0] sm:$0xf]
    %v1665 = vld [vmem:[%s3 + $0xa4] sm:$0xf]
    %v1666 = vld [vmem:[%s3 + $0xa8] sm:$0xf]
    %v1667 = vld [vmem:[%s3 + $0xac] sm:$0xf]
    %v1668 = vld [vmem:[%s3 + $0xb0] sm:$0xf]
    %v1669 = vld [vmem:[%s3 + $0xb4] sm:$0xf]
    %v1670 = vld [vmem:[%s3 + $0xb8] sm:$0xf]
    %v1671 = vld [vmem:[%s3 + $0xbc] sm:$0xf]
    %v1672 = vld [vmem:[%s3 + $0xc0] sm:$0xf]
    %v1673 = vld [vmem:[%s3 + $0xc4] sm:$0xf]
    %v1674 = vld [vmem:[%s3 + $0xc8] sm:$0xf]
    %v1675 = vld [vmem:[%s3 + $0xcc] sm:$0xf]
    %v1676 = vld [vmem:[%s3 + $0xd0] sm:$0xf]
    %v1677 = vld [vmem:[%s3 + $0xd4] sm:$0xf]
    %v1678 = vld [vmem:[%s3 + $0xd8] sm:$0xf]
    %v1679 = vld [vmem:[%s3 + $0xdc] sm:$0xf]
    %v1680 = vld [vmem:[%s3 + $0xe0] sm:$0xf]
    %v1681 = vld [vmem:[%s3 + $0xe4] sm:$0xf]
    %v1682 = vld [vmem:[%s3 + $0xe8] sm:$0xf]
    %v1683 = vld [vmem:[%s3 + $0xec] sm:$0xf]
    %v1684 = vld [vmem:[%s3 + $0xf0] sm:$0xf]
    %v1685 = vld [vmem:[%s3 + $0xf4] sm:$0xf]
    %v1686 = vld [vmem:[%s3 + $0xf8] sm:$0xf]
    %v1687 = vld [vmem:[%s3 + $0xfc] sm:$0xf]
    %v1752 = vunpack.c.l.b16 %v1624
    %v1753 = vunpack.c.l.b16 %v1625
    %v1754 = vunpack.c.l.b16 %v1626
    %v1755 = vunpack.c.l.b16 %v1627
    %v1756 = vunpack.c.l.b16 %v1628
    %v1757 = vunpack.c.l.b16 %v1629
    %v1758 = vunpack.c.l.b16 %v1630
    %v1759 = vunpack.c.l.b16 %v1631
    %v1760 = vunpack.c.l.b16 %v1632
    %v1761 = vunpack.c.l.b16 %v1633
    %v1762 = vunpack.c.l.b16 %v1634
    %v1763 = vunpack.c.l.b16 %v1635
    %v1764 = vunpack.c.l.b16 %v1636
    %v1765 = vunpack.c.l.b16 %v1637
    %v1766 = vunpack.c.l.b16 %v1638
    %v1767 = vunpack.c.l.b16 %v1639
    %v1768 = vunpack.c.l.b16 %v1640
    %v1769 = vunpack.c.l.b16 %v1641
    %v1770 = vunpack.c.l.b16 %v1642
    %v1771 = vunpack.c.l.b16 %v1643
    %v1772 = vunpack.c.l.b16 %v1644
    %v1773 = vunpack.c.l.b16 %v1645
    %v1774 = vunpack.c.l.b16 %v1646
    %v1775 = vunpack.c.l.b16 %v1647
    %v1776 = vunpack.c.l.b16 %v1648
    %v1777 = vunpack.c.l.b16 %v1649
    %v1778 = vunpack.c.l.b16 %v1650
    %v1779 = vunpack.c.l.b16 %v1651
    %v1780 = vunpack.c.l.b16 %v1652
    %v1781 = vunpack.c.l.b16 %v1653
    %v1782 = vunpack.c.l.b16 %v1654
    %v1783 = vunpack.c.l.b16 %v1655
    %v1784 = vunpack.c.l.b16 %v1656
    %v1785 = vunpack.c.l.b16 %v1657
    %v1786 = vunpack.c.l.b16 %v1658
    %v1787 = vunpack.c.l.b16 %v1659
    %v1788 = vunpack.c.l.b16 %v1660
    %v1789 = vunpack.c.l.b16 %v1661
    %v1790 = vunpack.c.l.b16 %v1662
    %v1791 = vunpack.c.l.b16 %v1663
    %v1792 = vunpack.c.l.b16 %v1664
    %v1793 = vunpack.c.l.b16 %v1665
    %v1794 = vunpack.c.l.b16 %v1666
    %v1795 = vunpack.c.l.b16 %v1667
    %v1796 = vunpack.c.l.b16 %v1668
    %v1797 = vunpack.c.l.b16 %v1669
    %v1798 = vunpack.c.l.b16 %v1670
    %v1799 = vunpack.c.l.b16 %v1671
    %v1800 = vunpack.c.l.b16 %v1672
    %v1801 = vunpack.c.l.b16 %v1673
    %v1802 = vunpack.c.l.b16 %v1674
    %v1803 = vunpack.c.l.b16 %v1675
    %v1804 = vunpack.c.l.b16 %v1676
    %v1805 = vunpack.c.l.b16 %v1677
    %v1806 = vunpack.c.l.b16 %v1678
    %v1807 = vunpack.c.l.b16 %v1679
    %v1808 = vunpack.c.l.b16 %v1680
    %v1809 = vunpack.c.l.b16 %v1681
    %v1810 = vunpack.c.l.b16 %v1682
    %v1811 = vunpack.c.l.b16 %v1683
    %v1812 = vunpack.c.l.b16 %v1684
    %v1813 = vunpack.c.l.b16 %v1685
    %v1814 = vunpack.c.l.b16 %v1686
    %v1815 = vunpack.c.l.b16 %v1687
    %v1816 = vpack.c.b16 %v1753, %v1752
    %v1817 = vpack.c.b16 %v1755, %v1754
    %v1818 = vpack.c.b16 %v1757, %v1756
    %v1819 = vpack.c.b16 %v1759, %v1758
    %v1820 = vpack.c.b16 %v1761, %v1760
    %v1821 = vpack.c.b16 %v1763, %v1762
    %v1822 = vpack.c.b16 %v1765, %v1764
    %v1823 = vpack.c.b16 %v1767, %v1766
    %v1824 = vpack.c.b16 %v1769, %v1768
    %v1825 = vpack.c.b16 %v1771, %v1770
    %v1826 = vpack.c.b16 %v1773, %v1772
    %v1827 = vpack.c.b16 %v1775, %v1774
    %v1828 = vpack.c.b16 %v1777, %v1776
    %v1829 = vpack.c.b16 %v1779, %v1778
    %v1830 = vpack.c.b16 %v1781, %v1780
    %v1831 = vpack.c.b16 %v1783, %v1782
    %v1832 = vpack.c.b16 %v1785, %v1784
    %v1833 = vpack.c.b16 %v1787, %v1786
    %v1834 = vpack.c.b16 %v1789, %v1788
    %v1835 = vpack.c.b16 %v1791, %v1790
    %v1836 = vpack.c.b16 %v1793, %v1792
    %v1837 = vpack.c.b16 %v1795, %v1794
    %v1838 = vpack.c.b16 %v1797, %v1796
    %v1839 = vpack.c.b16 %v1799, %v1798
    %v1840 = vpack.c.b16 %v1801, %v1800
    %v1841 = vpack.c.b16 %v1803, %v1802
    %v1842 = vpack.c.b16 %v1805, %v1804
    %v1843 = vpack.c.b16 %v1807, %v1806
    %v1844 = vpack.c.b16 %v1809, %v1808
    %v1845 = vpack.c.b16 %v1811, %v1810
    %v1846 = vpack.c.b16 %v1813, %v1812
    %v1847 = vpack.c.b16 %v1815, %v1814
    %1880 = vmatprep.subr.bf16.mxu0 0
    %1881 = vmatpush1.bf16.msra.mxu0 %v1823
    %1882 = vmatprep.subr.bf16.mxu0 0
    %1883 = vmatpush1.bf16.msra.mxu0 %v1822
    %1884 = vmatprep.subr.bf16.mxu0 0
    %1885 = vmatpush1.bf16.msra.mxu0 %v1821
    %1886 = vmatprep.subr.bf16.mxu0 0
    %1887 = vmatpush1.bf16.msra.mxu0 %v1820
    %1888 = vmatprep.subr.bf16.mxu0 0
    %1889 = vmatpush1.bf16.msra.mxu0 %v1819
    %1890 = vmatprep.subr.bf16.mxu0 0
    %1891 = vmatpush1.bf16.msra.mxu0 %v1818
    %1892 = vmatprep.subr.bf16.mxu0 0
    %1893 = vmatpush1.bf16.msra.mxu0 %v1817
    %1894 = vmatprep.subr.bf16.mxu0 0
    %1895 = vmatpush1.bf16.msra.mxu0 %v1816
    %1896 = vmatprep.subr.bf16.mxu0 0
    %1897 = vmatpush2.bf16.msra.mxu0 %v1831
    %1898 = vmatprep.subr.bf16.mxu0 0
    %1899 = vmatpush2.bf16.msra.mxu0 %v1830
    %1900 = vmatprep.subr.bf16.mxu0 0
    %1901 = vmatpush2.bf16.msra.mxu0 %v1829
    %1902 = vmatprep.subr.bf16.mxu0 0
    %1903 = vmatpush2.bf16.msra.mxu0 %v1828
    %1904 = vmatprep.subr.bf16.mxu0 0
    %1905 = vmatpush2.bf16.msra.mxu0 %v1827
    %1906 = vmatprep.subr.bf16.mxu0 0
    %1907 = vmatpush2.bf16.msra.mxu0 %v1826
    %1908 = vmatprep.subr.bf16.mxu0 0
    %1909 = vmatpush2.bf16.msra.mxu0 %v1825
    %1910 = vmatprep.subr.bf16.mxu0 0
    %1911 = vmatpush2.bf16.msra.mxu0 %v1824
    %1912 = vmatprep.mubr.bf16.mxu0 %v1621
    %1913 = vmatmul.mubr.bf16.gmra.mxu0 %v1620
    %v1914 = vpop.f32.mrf.mxu0
    %v1915 = vadd.f32 0.0, %v1914
    %v1916 = vpop.f32.mrf.mxu0
    %v1917 = vpop.f32.mrf.mxu0
    %v1918 = vadd.f32 0.0, %v1917
    %v1919 = vpop.f32.mrf.mxu0
    %1920 = vdwg.mxu0
    %1921 = vmatprep.subr.bf16.mxu0 0
    %1922 = vmatpush1.bf16.msra.mxu0 %v1839
    %1923 = vmatprep.subr.bf16.mxu0 0
    %1924 = vmatpush1.bf16.msra.mxu0 %v1838
    %1925 = vmatprep.subr.bf16.mxu0 0
    %1926 = vmatpush1.bf16.msra.mxu0 %v1837
    %1927 = vmatprep.subr.bf16.mxu0 0
    %1928 = vmatpush1.bf16.msra.mxu0 %v1836
    %1929 = vmatprep.subr.bf16.mxu0 0
    %1930 = vmatpush1.bf16.msra.mxu0 %v1835
    %1931 = vmatprep.subr.bf16.mxu0 0
    %1932 = vmatpush1.bf16.msra.mxu0 %v1834
    %1933 = vmatprep.subr.bf16.mxu0 0
    %1934 = vmatpush1.bf16.msra.mxu0 %v1833
    %1935 = vmatprep.subr.bf16.mxu0 0
    %1936 = vmatpush1.bf16.msra.mxu0 %v1832
    %1937 = vmatprep.subr.bf16.mxu0 0
    %1938 = vmatpush2.bf16.msra.mxu0 %v1847
    %1939 = vmatprep.subr.bf16.mxu0 0
    %1940 = vmatpush2.bf16.msra.mxu0 %v1846
    %1941 = vmatprep.subr.bf16.mxu0 0
    %1942 = vmatpush2.bf16.msra.mxu0 %v1845
    %1943 = vmatprep.subr.bf16.mxu0 0
    %1944 = vmatpush2.bf16.msra.mxu0 %v1844
    %1945 = vmatprep.subr.bf16.mxu0 0
    %1946 = vmatpush2.bf16.msra.mxu0 %v1843
    %1947 = vmatprep.subr.bf16.mxu0 0
    %1948 = vmatpush2.bf16.msra.mxu0 %v1842
    %1949 = vmatprep.subr.bf16.mxu0 0
    %1950 = vmatpush2.bf16.msra.mxu0 %v1841
    %1951 = vmatprep.subr.bf16.mxu0 0
    %1952 = vmatpush2.bf16.msra.mxu0 %v1840
    %1953 = vmatprep.mubr.bf16.mxu0 %v1623
    %1954 = vmatmul.mubr.bf16.gmra.mxu0 %v1622
    %v1955 = vpop.f32.mrf.mxu0
    %v1956 = vadd.f32 %v1915, %v1955
    %v1957 = vpop.f32.mrf.mxu0
    %v1958 = vpop.f32.mrf.mxu0
    %v1959 = vadd.f32 %v1918, %v1958
    %v1960 = vpop.f32.mrf.mxu0
    %1961 = vdwg.mxu0
    %v1962 = vld [vmem:[#allocation2] sm:$0x1]
    %v1964 = vlaneseq
    %v1965 = vshrl.u32 %v1964, 7
    %v1966 = vsub.s32 0, %v1965
    %v1967 = vrot.slane %v1962, %v1966
    %v1969 = vadd.f32 %v1956, %v1967
    %v1970 = vadd.f32 %v1959, %v1967
    %v1971 = vsub.f32 0.0, %v1969
    %v1972 = vsub.f32 0.0, %v1970
    %v1973 = vmul.f32 %v1971, 1.442695
    %v1974 = vpow.pop %v1973
    %v1975 = vmul.f32 %v1972, 1.442695
    %v1976 = vpow.pop %v1975
    %v1977 = vadd.f32 %v1974, 1.0
    %v1978 = vadd.f32 %v1976, 1.0
    %v1979 = vrcp.pop %v1977
    %v1980 = vmul.f32 1.0, %v1979
    %v1981 = vrcp.pop %v1978
    %v1982 = vmul.f32 1.0, %v1981
    %vm1983 = vcmask 7168
    %1984 = vst.msk [vmem:[%s5] sm:$0xff] %vm1983, %v1980
    %1985 = vst.msk [vmem:[%s5 + $0x8] sm:$0xff] %vm1983, %v1982
    // Predicated region
    $region26: #{discriminator_forward.1} parent=1 // pred_check
      _
    $region27: #{discriminator_forward.1} parent=1 // pred_check_branch
      %1987 = sbr.rel (0) target = $region29
    $region28: #{discriminator_forward.1} parent=1 // pred_region
      _
    $region29: #{discriminator_forward.1} parent=1 // pred_fallthru
      _
    // Predicated region
    $region30: #{discriminator_forward.1} parent=1 // pred_check
      _
    $region31: #{discriminator_forward.1} parent=1 // pred_check_branch
      %1989 = sbr.rel (0) target = $region33
    $region32: #{discriminator_forward.1} parent=1 // pred_region
      _
    $region33: #{discriminator_forward.1} parent=1 // pred_fallthru
      _
    %1990 = vsyncpa [#allocation4], 1

</llo_original>
